<compile_context>
chip_gen: v7x
topology: tpu7x:2x2x1
jax: 0.10.0
libtpu: 0.0.40
codegen_flags: <defaults>
</compile_context>

<pallas_src>
import math

import jax
import jax.numpy as jnp
from jax.experimental import pallas as pl
from jax.experimental.pallas import tpu as pltpu


def _lora_linear_kernel(x_ref, wt_ref, b_ref, xa_ref, bB_ref, o_ref, acc_ref):
    """One (tm, tn) output tile, accumulated over the K grid axis.

    x_ref : (tm, tk)  activations tile
    wt_ref: (tk, tn)  base weight tile, pre-transposed to (K, O) layout
    b_ref : (1, tn)   base bias tile
    xa_ref: (tm, R)   precomputed scaling * (x @ lora_A) tile
    bB_ref: (R, tn)   lora_B tile
    o_ref : (tm, tn)  output tile
    acc_ref: (tm, tn) f32 scratch (base accumulator)
    """
    k = pl.program_id(2)

    @pl.when(k == 0)
    def _init():
        acc_ref[...] = jnp.zeros_like(acc_ref)

    # Base partial: plain (tm, tk) x (tk, tn) MXU matmul, f32 accumulation.
    acc_ref[...] += jnp.dot(x_ref[...], wt_ref[...],
                            preferred_element_type=jnp.float32)

    @pl.when(k == pl.num_programs(2) - 1)
    def _finalize():
        # Single rank-R MXU pass per output tile; scaling already folded in.
        lora = jnp.dot(xa_ref[...], bB_ref[...],
                       preferred_element_type=jnp.float32)
        out = acc_ref[...] + b_ref[...].astype(jnp.float32) + lora
        o_ref[...] = out.astype(o_ref.dtype)


def _round_up(v, m):
    return ((v + m - 1) // m) * m


def _pad_axis(x, multiple, axis):
    pad = (-x.shape[axis]) % multiple
    if pad == 0:
        return x
    widths = [(0, 0)] * x.ndim
    widths[axis] = (0, pad)
    return jnp.pad(x, widths)


def lora_linear(x2d, weight, bias, lora_A, lora_B, scaling,
                *, tm=None, tn=256, tk=512):
    """x2d: (M, K); weight: (O, K); bias: (O,); lora_A: (K, R); lora_B: (R, O).

    Returns (M, O) in x2d.dtype.
    """
    M, K = x2d.shape
    O = weight.shape[0]
    R = lora_A.shape[1]
    dt_size = jnp.dtype(x2d.dtype).itemsize

    # Tile selection: raise tm for large M (arithmetic intensity on the weight
    # stream scales with tm); clamp tiles to the padded problem so small
    # shapes aren't over-padded. Keep everything lane-dense (multiples of
    # 8 / 128 on the last two dims).
    if tm is None:
        tm = 256 if M >= 512 else 128
    tm = min(tm, _round_up(M, 8))
    tn = min(tn, _round_up(O, 128))
    tk = min(tk, _round_up(K, 128))

    # LoRA-A hoist: xa = scaling * (x @ lora_A) computed once, outside the
    # kernel's (j, k) loops. Rank-R, trivial FLOPs, mem-bound; XLA fuses the
    # scalar scaling into it. Also removes the static-float capture from the
    # kernel (no recompile per scaling value).
    xa = (jnp.dot(x2d, lora_A, preferred_element_type=jnp.float32)
          * scaling).astype(x2d.dtype)

    # Pre-transpose the frozen (O, K) weight once to (K, O) so the kernel
    # consumes a native MXU matmul (no per-tile transpose). For frozen
    # adapters/serving do this offline.
    w_t = weight.T

    # Zero-pad tiled axes to tile multiples (exact for the matmul reduction;
    # padded output rows/cols are sliced off below).
    xp = _pad_axis(_pad_axis(x2d, tm, 0), tk, 1)
    wtp = _pad_axis(_pad_axis(w_t, tk, 0), tn, 1)
    bp = _pad_axis(bias.reshape(1, O), tn, 1)
    xap = _pad_axis(xa, tm, 0)
    bBp = _pad_axis(lora_B, tn, 1)

    Mp, Kp = xp.shape
    Op = wtp.shape[1]
    grid = (Mp // tm, Op // tn, Kp // tk)

    # Per-step VMEM footprint (double-buffered inputs + f32 accumulator);
    # request comfortably more than needed, capped under v7x's 64 MiB.
    est = 2 * (tm * tk + tk * tn + tn + tm * R + R * tn + tm * tn) * dt_size \
        + tm * tn * 4
    vmem_limit = min(64 * 1024 * 1024, max(2 * est, 32 * 1024 * 1024))

    cost = pl.CostEstimate(
        flops=2 * Mp * Kp * Op + 2 * Mp * R * Op,
        transcendentals=0,
        bytes_accessed=(Mp * Kp + Kp * Op + Mp * Op + Mp * R + R * Op + Op)
        * dt_size,
    )

    out = pl.pallas_call(
        _lora_linear_kernel,
        out_shape=jax.ShapeDtypeStruct((Mp, Op), x2d.dtype),
        grid_spec=pltpu.PrefetchScalarGridSpec(
            num_scalar_prefetch=0,
            grid=grid,
            in_specs=[
                pl.BlockSpec((tm, tk), lambda i, j, k: (i, k)),   # x
                pl.BlockSpec((tk, tn), lambda i, j, k: (k, j)),   # W.T (K, O)
                pl.BlockSpec((1, tn), lambda i, j, k: (0, j)),    # bias
                pl.BlockSpec((tm, R), lambda i, j, k: (i, 0)),    # xa (scaled)
                pl.BlockSpec((R, tn), lambda i, j, k: (0, j)),    # lora_B
            ],
            out_specs=pl.BlockSpec((tm, tn), lambda i, j, k: (i, j)),
            scratch_shapes=[
                pltpu.VMEM((tm, tn), jnp.float32),   # base accumulator
            ],
        ),
        compiler_params=pltpu.CompilerParams(
            dimension_semantics=("parallel", "parallel", "arbitrary"),
            vmem_limit_bytes=int(vmem_limit),
        ),
        cost_estimate=cost,
    )(xp, wtp, bp, xap, bBp)

    return out[:M, :O]


def lora_layer_forward(x, weight, bias, lora_A, lora_B, scaling,
                       *, tm=None, tn=256, tk=512):
    """x: (batch, seq, in_features) -> (batch, seq, out_features)."""
    batch, seq, K = x.shape
    O = weight.shape[0]
    out2d = lora_linear(x.reshape(batch * seq, K), weight, bias,
                        lora_A, lora_B, scaling, tm=tm, tn=tn, tk=tk)
    return out2d.reshape(batch, seq, O)


if __name__ == "__main__":
    # Shapes chosen so the grid exercises every axis:
    #   M = batch*seq = 256 -> 2 i-tiles (tm=128), O = 512 -> 2 j-tiles
    #   (tn=256), K = 1024 -> 2 k-tiles (tk=512) so init/finalize run.
    batch, seq = 2, 128
    in_features, out_features = 1024, 512
    rank, alpha = 8, 32.0
    scaling = alpha / rank
    dtype = jnp.bfloat16

    key = jax.random.PRNGKey(0)
    k_x, k_w, k_b, k_a, k_lb = jax.random.split(key, 5)

    # Deterministic synthetic init (shapes from LoRALayer.__init__):
    #   base weight (out, in), bias (out,)  -- nn.Linear-style uniform init.
    wb = 1.0 / math.sqrt(in_features)
    weight = jax.random.uniform(
        k_w, (out_features, in_features), jnp.float32, -wb, wb).astype(dtype)
    bias = jax.random.uniform(
        k_b, (out_features,), jnp.float32, -wb, wb).astype(dtype)

    #   lora_A (in, rank): kaiming_uniform(a=sqrt(5)) -> bound = 1/sqrt(rank)
    ab = 1.0 / math.sqrt(rank)
    lora_A = jax.random.uniform(
        k_a, (in_features, rank), jnp.float32, -ab, ab).astype(dtype)

    #   lora_B (rank, out): module inits to zeros; use small nonzero values so
    #   the LoRA matmul path is actually exercised numerically.
    lora_B = (0.02 * jax.random.normal(
        k_lb, (rank, out_features), jnp.float32)).astype(dtype)

    x = jax.random.normal(k_x, (batch, seq, in_features), jnp.float32).astype(dtype)

    out = jax.block_until_ready(
        lora_layer_forward(x, weight, bias, lora_A, lora_B, scaling)
    )

    # Pure-JAX reference (f32) for a correctness gate.
    xf = x.astype(jnp.float32)
    ref = (
        xf @ weight.astype(jnp.float32).T
        + bias.astype(jnp.float32)[None, None, :]
        + (xf @ lora_A.astype(jnp.float32) @ lora_B.astype(jnp.float32)) * scaling
    )

    assert out.shape == (batch, seq, out_features)
    assert out.dtype == dtype
    assert jnp.allclose(out.astype(jnp.float32), ref, rtol=5e-2, atol=5e-2), \
        "mismatch vs reference"

    print("KERNEL_OK")
</pallas_src>

<mosaic_0001>
module attributes {stable_mosaic.version = 11 : i64} {
  func.func @_lora_linear_kernel(%arg0: i32, %arg1: i32, %arg2: i32, %arg3: memref<128x512xbf16, #tpu.memory_space<vmem>>, %arg4: memref<512x256xbf16, #tpu.memory_space<vmem>>, %arg5: memref<1x256xbf16, #tpu.memory_space<vmem>>, %arg6: memref<128x8xbf16, #tpu.memory_space<vmem>>, %arg7: memref<8x256xbf16, #tpu.memory_space<vmem>>, %arg8: memref<128x256xbf16, #tpu.memory_space<vmem>>, %arg9: memref<128x256xf32, #tpu.memory_space<vmem>>) attributes {dimension_semantics = [#tpu.dimension_semantics<parallel>, #tpu.dimension_semantics<parallel>, #tpu.dimension_semantics<arbitrary>], iteration_bounds = array<i64: 2, 2, 2>, scalar_prefetch = 0 : i64, scratch_operands = 1 : i64, tpu.core_type = #tpu.core_type<tc>, window_params = [{transform_indices = @transform_0, window_bounds = array<i64: 128, 512>}, {transform_indices = @transform_1, window_bounds = array<i64: 512, 256>}, {transform_indices = @transform_2, window_bounds = array<i64: 1, 256>}, {transform_indices = @transform_3, window_bounds = array<i64: 128, 8>}, {transform_indices = @transform_4, window_bounds = array<i64: 8, 256>}, {transform_indices = @transform_5, window_bounds = array<i64: 128, 256>}]} {
    %c0_i32 = arith.constant 0 : i32
    %0 = arith.cmpi eq, %arg2, %c0_i32 : i32
    %1 = arith.extui %0 : i1 to i32
    %c0_i32_0 = arith.constant 0 : i32
    %2 = arith.cmpi ne, %1, %c0_i32_0 : i32
    scf.if %2 {
      %cst_9 = arith.constant 0.000000e+00 : f32
      %12 = vector.broadcast %cst_9 : f32 to vector<128x256xf32>
      %c0_10 = arith.constant 0 : index
      %c0_11 = arith.constant 0 : index
      %13 = vector.load %arg9[%c0_10, %c0_11] : memref<128x256xf32, #tpu.memory_space<vmem>>, vector<128x256xf32>
      tpu.vector_store %arg9[%c0_10, %c0_11], %12 {strides = array<i32>} : memref<128x256xf32, #tpu.memory_space<vmem>>, vector<128x256xf32>,
    } else {
    }
    %c0 = arith.constant 0 : index
    %c0_1 = arith.constant 0 : index
    %3 = vector.load %arg9[%c0, %c0_1] : memref<128x256xf32, #tpu.memory_space<vmem>>, vector<128x256xf32>
    %c0_2 = arith.constant 0 : index
    %c0_3 = arith.constant 0 : index
    %4 = vector.load %arg3[%c0_2, %c0_3] : memref<128x512xbf16, #tpu.memory_space<vmem>>, vector<128x512xbf16>
    %c0_4 = arith.constant 0 : index
    %c0_5 = arith.constant 0 : index
    %5 = vector.load %arg4[%c0_4, %c0_5] : memref<512x256xbf16, #tpu.memory_space<vmem>>, vector<512x256xbf16>
    %cst = arith.constant dense<0.000000e+00> : vector<128x256xf32>
    %6 = tpu.matmul %4, %5, %cst {dimension_numbers = #tpu.dot_dimension_numbers<[1], [0], [0], [1], [0, 0, 1, 1], [], []>} : vector<128x512xbf16>, vector<512x256xbf16>, vector<128x256xf32> -> vector<128x256xf32>
    %7 = arith.addf %3, %6 : vector<128x256xf32>
    %c0_6 = arith.constant 0 : index
    %c0_7 = arith.constant 0 : index
    %8 = vector.load %arg9[%c0_6, %c0_7] : memref<128x256xf32, #tpu.memory_space<vmem>>, vector<128x256xf32>
    tpu.vector_store %arg9[%c0_6, %c0_7], %7 {strides = array<i32>} : memref<128x256xf32, #tpu.memory_space<vmem>>, vector<128x256xf32>,
    %c1_i32 = arith.constant 1 : i32
    %9 = arith.cmpi eq, %arg2, %c1_i32 : i32
    %10 = arith.extui %9 : i1 to i32
    %c0_i32_8 = arith.constant 0 : i32
    %11 = arith.cmpi ne, %10, %c0_i32_8 : i32
    scf.if %11 {
      %c0_9 = arith.constant 0 : index
      %c0_10 = arith.constant 0 : index
      %12 = vector.load %arg6[%c0_9, %c0_10] : memref<128x8xbf16, #tpu.memory_space<vmem>>, vector<128x8xbf16>
      %c0_11 = arith.constant 0 : index
      %c0_12 = arith.constant 0 : index
      %13 = vector.load %arg7[%c0_11, %c0_12] : memref<8x256xbf16, #tpu.memory_space<vmem>>, vector<8x256xbf16>
      %cst_13 = arith.constant dense<0.000000e+00> : vector<128x256xf32>
      %14 = tpu.matmul %12, %13, %cst_13 {dimension_numbers = #tpu.dot_dimension_numbers<[1], [0], [0], [1], [0, 0, 1, 1], [], []>} : vector<128x8xbf16>, vector<8x256xbf16>, vector<128x256xf32> -> vector<128x256xf32>
      %c0_14 = arith.constant 0 : index
      %c0_15 = arith.constant 0 : index
      %15 = vector.load %arg9[%c0_14, %c0_15] : memref<128x256xf32, #tpu.memory_space<vmem>>, vector<128x256xf32>
      %c0_16 = arith.constant 0 : index
      %c0_17 = arith.constant 0 : index
      %16 = vector.load %arg5[%c0_16, %c0_17] : memref<1x256xbf16, #tpu.memory_space<vmem>>, vector<1x256xbf16>
      %17 = arith.extf %16 : vector<1x256xbf16> to vector<1x256xf32>
      %18 = vector.broadcast %17 : vector<1x256xf32> to vector<128x256xf32>
      %19 = arith.addf %15, %18 : vector<128x256xf32>
      %20 = arith.addf %19, %14 : vector<128x256xf32>
      %21 = arith.truncf %20 : vector<128x256xf32> to vector<128x256xbf16>
      %c0_18 = arith.constant 0 : index
      %c0_19 = arith.constant 0 : index
      %22 = vector.load %arg8[%c0_18, %c0_19] : memref<128x256xbf16, #tpu.memory_space<vmem>>, vector<128x256xbf16>
      tpu.vector_store %arg8[%c0_18, %c0_19], %21 {strides = array<i32>} : memref<128x256xbf16, #tpu.memory_space<vmem>>, vector<128x256xbf16>,
    } else {
    }
    return
  }
  func.func @transform_0(%arg0: i32, %arg1: i32, %arg2: i32) -> (i32, i32) {
    %c0_i32 = arith.constant 0 : i32
    return %arg0, %arg2 : i32, i32
  }
  func.func @transform_1(%arg0: i32, %arg1: i32, %arg2: i32) -> (i32, i32) {
    %c0_i32 = arith.constant 0 : i32
    return %arg2, %arg1 : i32, i32
  }
  func.func @transform_2(%arg0: i32, %arg1: i32, %arg2: i32) -> (i32, i32) {
    %c0_i32 = arith.constant 0 : i32
    %c0_i32_0 = arith.constant 0 : i32
    return %c0_i32, %arg1 : i32, i32
  }
  func.func @transform_3(%arg0: i32, %arg1: i32, %arg2: i32) -> (i32, i32) {
    %c0_i32 = arith.constant 0 : i32
    %c0_i32_0 = arith.constant 0 : i32
    return %arg0, %c0_i32 : i32, i32
  }
  func.func @transform_4(%arg0: i32, %arg1: i32, %arg2: i32) -> (i32, i32) {
    %c0_i32 = arith.constant 0 : i32
    %c0_i32_0 = arith.constant 0 : i32
    return %c0_i32, %arg1 : i32, i32
  }
  func.func @transform_5(%arg0: i32, %arg1: i32, %arg2: i32) -> (i32, i32) {
    %c0_i32 = arith.constant 0 : i32
    return %arg0, %arg1 : i32, i32
  }
}

</mosaic_0001>

<llo_original>
// kernel: tpu_custom_call.1
$region0: #{tpu_custom_call.1}
  #allocation0 [shape = 'u32[]', space=smem, size = 0x4, offset = 0x4, fixed_abs, tag = 'smem constant byte address 0x4 - core index']
  #allocation1 [shape = 'u32[144,128]{1,0:T(1,128)}', space=vmem, size = 0x12000, scoped, tag = 'internal scratch']
  #allocation2 [shape = 'f32[128,256]{1,0:T(8,128)}', space=vmem, size = 0x20000, scoped, tag = 'scratch operand']
  %s0 = inlined_call_operand.hbm [shape: bf16[256,1024], index: 0, kind: input, shape index: {}]
  %s1 = inlined_call_operand.hbm [shape: bf16[1024,512], index: 1, kind: input, shape index: {}]
  %s2 = inlined_call_operand.vmem [shape: bf16[1,512], index: 2, kind: input, shape index: {}]
  %s3 = inlined_call_operand.vmem [shape: bf16[256,8], index: 3, kind: input, shape index: {}]
  %s4 = inlined_call_operand.vmem [shape: bf16[8,512], index: 4, kind: input, shape index: {}]
  %s5 = inlined_call_operand.hbm [shape: bf16[256,512], index: 5, kind: output, shape index: {}]
  %s6 = sld [smem:[#allocation0]]
  $region69: #{tpu_custom_call.1} parent=0
    _
  %s8 = ssub.s32 1, %s6
  %s9 = scalar_select 0, %s8, %s6
  $region1: #{tpu_custom_call.1} parent=0
    #allocation3 [shape = 'u8[262144]{0}', space=vmem, size = 0x40000, scoped, tag = 'input window, operand 0']
    #allocation4 [shape = 's32[2]{0}', space=sflag, size = 0x8, scoped, tag = 'scoped memory for tpu_custom_call.1']
    #allocation5 [shape = 's32[2]{0}', space=sflag, size = 0x8, scoped, tag = 'scoped memory for tpu_custom_call.1']
    #allocation6 [shape = 'u8[524288]{0}', space=vmem, size = 0x80000, scoped, tag = 'input window, operand 1']
    #allocation7 [shape = 's32[2]{0}', space=sflag, size = 0x8, scoped, tag = 'scoped memory for tpu_custom_call.1']
    #allocation8 [shape = 'u8[131072]{0}', space=vmem, size = 0x20000, scoped, tag = 'output window, operand 0']
    %10 = vsyncpa [#allocation4], 0
    %s11 = scalar_lea.sflag [#allocation4], 1
    %12 = vsyncpa %s11, 0
    %13 = vsyncpa [#allocation7], 0
    %s14 = scalar_lea.sflag [#allocation7], 1
    %15 = vsyncpa %s14, 0
    %16 = vsyncpa [#allocation5], 0
    %s17 = scalar_lea.sflag [#allocation5], 1
    %18 = vsyncpa %s17, 0
    loop: start=0, step=1, limit=10
    $region2: #{tpu_custom_call.1} parent=1 // loop_pre_header
      _
    $region3: #{tpu_custom_call.1} parent=1 // loop_header
      %s20 = sphi 0, %s24
      %p21 = scmp.ge.s32.totalorder %s20, 10
      %s27 = sphi 0, %s46
      %s28 = sphi 0, %s42
      %s29 = sphi 0, %s38
      %s30 = sphi 0, %s27
      %s31 = sphi 0, %s28
      %s32 = sphi 0, %s29
      %s33 = sphi 0, %s30
      %s34 = sphi 0, %s31
      %s35 = sphi 0, %s32
      %s51 = sphi 0, %s53
      %s54 = sphi 0, %s51
      %s55 = sphi 0, %s54
      %s71 = sphi 0, %s55
      %s79 = sphi 0, %s81
      %s82 = sphi 0, %s79
      %s83 = sphi 0, %s82
      %s99 = sphi 0, %s83
      %s105 = sphi 0, %s107
      %s108 = sphi 0, %s105
      %s109 = sphi 0, %s108
      %s125 = sphi 0, %s109
      %s131 = sphi 0, %s133
      %s134 = sphi 0, %s131
      %s135 = sphi 0, %s134
      %s151 = sphi 0, %s135
      %s157 = sphi 0, %s159
      %s160 = sphi 0, %s157
      %s161 = sphi 0, %s160
      %s177 = sphi 0, %s161
      %s185 = sphi 0, %s187
      %s188 = sphi 0, %s185
      %s189 = sphi 0, %s188
      %s205 = sphi 0, %s189
    $region4: #{tpu_custom_call.1} parent=1 // loop_header_branch
      %23 = sbr.rel (%p21) target = $region8
    $region5: #{tpu_custom_call.1} parent=1 // loop_body
      %s25 = ssub.s32 %s20, 1
      %s26 = ssub.s32 %s20, 2
      %s36 = sadd.s32 1, %s29
      %p37 = scmp.ge.s32.totalorder %s36, 2
      %s38 = scalar_select %p37, 0, %s36
      %s39 = sadd.s32 1, %s28
      %s40 = scalar_select %p37, %s39, %s28
      %p41 = scmp.ge.s32.totalorder %s40, 2
      %s42 = scalar_select %p41, 0, %s40
      %s43 = sadd.s32 1, %s27
      %s44 = scalar_select %p41, %s43, %s27
      %p45 = scmp.ge.s32.totalorder %s44, 2
      %s46 = scalar_select %p45, 0, %s44
      %s47 = ssub.s32 %s27, %s46
      %s48 = ssub.s32 %s29, %s38
      %s49 = sor.u32 %s47, %s48
      %p50 = scmp.eq.s32.totalorder %s49, 0
      %s52 = sadd.s32 %s51, 1
      %s53 = scalar_select %p50, %s51, %s52
      %p56 = pneg %p50
      %p57 = scmp.eq.s32.totalorder %s20, 7
      %p58 = por %p56, %p57
      %p59 = scmp.ne.s32.totalorder %s51, %s54
      %p60 = scmp.eq.s32.totalorder %s20, 0
      %p61 = por %p59, %p60
      %p62 = scmp.ne.s32.totalorder %s51, %s54
      %p63 = scmp.eq.s32.totalorder %s25, 7
      %p64 = por %p62, %p63
      %p65 = scmp.ne.s32.totalorder %s54, %s55
      %p66 = scmp.eq.s32.totalorder %s25, 0
      %p67 = por %p65, %p66
      %p68 = scmp.ne.s32.totalorder %s54, %s55
      %p69 = scmp.eq.s32.totalorder %s26, 7
      %p70 = por %p68, %p69
      %p72 = scmp.ne.s32.totalorder %s55, %s71
      %p73 = scmp.eq.s32.totalorder %s26, 0
      %p74 = por %p72, %p73
      %s75 = ssub.s32 %s29, %s38
      %s76 = ssub.s32 %s28, %s42
      %s77 = sor.u32 %s75, %s76
      %p78 = scmp.eq.s32.totalorder %s77, 0
      %s80 = sadd.s32 %s79, 1
      %s81 = scalar_select %p78, %s79, %s80
      %p84 = pneg %p78
      %p85 = scmp.eq.s32.totalorder %s20, 7
      %p86 = por %p84, %p85
      %p87 = scmp.ne.s32.totalorder %s79, %s82
      %p88 = scmp.eq.s32.totalorder %s20, 0
      %p89 = por %p87, %p88
      %p90 = scmp.ne.s32.totalorder %s79, %s82
      %p91 = scmp.eq.s32.totalorder %s25, 7
      %p92 = por %p90, %p91
      %p93 = scmp.ne.s32.totalorder %s82, %s83
      %p94 = scmp.eq.s32.totalorder %s25, 0
      %p95 = por %p93, %p94
      %p96 = scmp.ne.s32.totalorder %s82, %s83
      %p97 = scmp.eq.s32.totalorder %s26, 7
      %p98 = por %p96, %p97
      %p100 = scmp.ne.s32.totalorder %s83, %s99
      %p101 = scmp.eq.s32.totalorder %s26, 0
      %p102 = por %p100, %p101
      %s103 = ssub.s32 %s28, %s42
      %p104 = scmp.eq.s32.totalorder %s103, 0
      %s106 = sadd.s32 %s105, 1
      %s107 = scalar_select %p104, %s105, %s106
      %p110 = pneg %p104
      %p111 = scmp.eq.s32.totalorder %s20, 7
      %p112 = por %p110, %p111
      %p113 = scmp.ne.s32.totalorder %s105, %s108
      %p114 = scmp.eq.s32.totalorder %s20, 0
      %p115 = por %p113, %p114
      %p116 = scmp.ne.s32.totalorder %s105, %s108
      %p117 = scmp.eq.s32.totalorder %s25, 7
      %p118 = por %p116, %p117
      %p119 = scmp.ne.s32.totalorder %s108, %s109
      %p120 = scmp.eq.s32.totalorder %s25, 0
      %p121 = por %p119, %p120
      %p122 = scmp.ne.s32.totalorder %s108, %s109
      %p123 = scmp.eq.s32.totalorder %s26, 7
      %p124 = por %p122, %p123
      %p126 = scmp.ne.s32.totalorder %s109, %s125
      %p127 = scmp.eq.s32.totalorder %s26, 0
      %p128 = por %p126, %p127
      %s129 = ssub.s32 %s27, %s46
      %p130 = scmp.eq.s32.totalorder %s129, 0
      %s132 = sadd.s32 %s131, 1
      %s133 = scalar_select %p130, %s131, %s132
      %p136 = pneg %p130
      %p137 = scmp.eq.s32.totalorder %s20, 7
      %p138 = por %p136, %p137
      %p139 = scmp.ne.s32.totalorder %s131, %s134
      %p140 = scmp.eq.s32.totalorder %s20, 0
      %p141 = por %p139, %p140
      %p142 = scmp.ne.s32.totalorder %s131, %s134
      %p143 = scmp.eq.s32.totalorder %s25, 7
      %p144 = por %p142, %p143
      %p145 = scmp.ne.s32.totalorder %s134, %s135
      %p146 = scmp.eq.s32.totalorder %s25, 0
      %p147 = por %p145, %p146
      %p148 = scmp.ne.s32.totalorder %s134, %s135
      %p149 = scmp.eq.s32.totalorder %s26, 7
      %p150 = por %p148, %p149
      %p152 = scmp.ne.s32.totalorder %s135, %s151
      %p153 = scmp.eq.s32.totalorder %s26, 0
      %p154 = por %p152, %p153
      %s155 = ssub.s32 %s28, %s42
      %p156 = scmp.eq.s32.totalorder %s155, 0
      %s158 = sadd.s32 %s157, 1
      %s159 = scalar_select %p156, %s157, %s158
      %p162 = pneg %p156
      %p163 = scmp.eq.s32.totalorder %s20, 7
      %p164 = por %p162, %p163
      %p165 = scmp.ne.s32.totalorder %s157, %s160
      %p166 = scmp.eq.s32.totalorder %s20, 0
      %p167 = por %p165, %p166
      %p168 = scmp.ne.s32.totalorder %s157, %s160
      %p169 = scmp.eq.s32.totalorder %s25, 7
      %p170 = por %p168, %p169
      %p171 = scmp.ne.s32.totalorder %s160, %s161
      %p172 = scmp.eq.s32.totalorder %s25, 0
      %p173 = por %p171, %p172
      %p174 = scmp.ne.s32.totalorder %s160, %s161
      %p175 = scmp.eq.s32.totalorder %s26, 7
      %p176 = por %p174, %p175
      %p178 = scmp.ne.s32.totalorder %s161, %s177
      %p179 = scmp.eq.s32.totalorder %s26, 0
      %p180 = por %p178, %p179
      %s181 = ssub.s32 %s27, %s46
      %s182 = ssub.s32 %s28, %s42
      %s183 = sor.u32 %s181, %s182
      %p184 = scmp.eq.s32.totalorder %s183, 0
      %s186 = sadd.s32 %s185, 1
      %s187 = scalar_select %p184, %s185, %s186
      %p190 = pneg %p184
      %p191 = scmp.eq.s32.totalorder %s20, 7
      %p192 = por %p190, %p191
      %p193 = scmp.ne.s32.totalorder %s185, %s188
      %p194 = scmp.eq.s32.totalorder %s20, 0
      %p195 = por %p193, %p194
      %p196 = scmp.ne.s32.totalorder %s185, %s188
      %p197 = scmp.eq.s32.totalorder %s25, 7
      %p198 = por %p196, %p197
      %p199 = scmp.ne.s32.totalorder %s188, %s189
      %p200 = scmp.eq.s32.totalorder %s25, 0
      %p201 = por %p199, %p200
      %p202 = scmp.ne.s32.totalorder %s188, %s189
      %p203 = scmp.eq.s32.totalorder %s26, 7
      %p204 = por %p202, %p203
      %p206 = scmp.ne.s32.totalorder %s189, %s205
      %p207 = scmp.eq.s32.totalorder %s26, 0
      %p208 = por %p206, %p207
      %p209 = scmp.le.s32.totalorder 1, %s20
      %p210 = scmp.lt.s32.totalorder %s20, 9
      %p211 = pnand %p209, %p210
      %p212 = pneg %p211
      // Predicated region
      $region9: #{tpu_custom_call.1} parent=5 // pred_check
        _
      $region10: #{tpu_custom_call.1} parent=5 // pred_check_branch
        %214 = sbr.rel (%p211) target = $region12
      $region11: #{tpu_custom_call.1} parent=5 // pred_region
        %s215 = ssub.s32 %s20, 1
      $region12: #{tpu_custom_call.1} parent=5 // pred_fallthru
        _
      %p216 = scmp.lt.s32.totalorder %s20, 8
      // Predicated region
      $region13: #{tpu_custom_call.1} parent=5 // pred_check
        %p217 = pneg %p216
      $region14: #{tpu_custom_call.1} parent=5 // pred_check_branch
        %219 = sbr.rel (%p217) target = $region16
      $region15: #{tpu_custom_call.1} parent=5 // pred_region
        // Predicated region
        $region17: #{tpu_custom_call.1} parent=15 // pred_check
          %p220 = pneg %p61
        $region18: #{tpu_custom_call.1} parent=15 // pred_check_branch
          %222 = sbr.rel (%p220) target = $region20
        $region19: #{tpu_custom_call.1} parent=15 // pred_region
          %s223 = sand.u32 %s51, 1
          %s224 = scalar_lea.sflag [#allocation4], %s223
          %s225 = sand.u32 %s51, 1
          %s226 = smul.addr %s225, 256
          %s227 = scalar_lea.vmem [#allocation3], %s226
          %s228 = smul.u32 16, %s27
          %s229 = smul.u32 4, %s29
          %s231 = ssub.s32 4096, 4096
          %232 = vsyncadd %s224, %s231
          %s233 = smul.addr %s228, 8
          %s234 = sadd.s32 %s229, %s233
          %s235 = smul.addr %s234, 64
          %s236 = scalar_lea.hbm %s0, %s235
          %s237 = sshll.u32 %s227, 4
          %s238 = int_to_ptr.vmem [resolvable:$true] %s237
          %243 = dma.hbm_to_vmem [thread:$0]  %s236, 4096, %s238, %s224, 512, 256, 16
        $region20: #{tpu_custom_call.1} parent=15 // pred_fallthru
          _
        // Predicated region
        $region21: #{tpu_custom_call.1} parent=15 // pred_check
          %p244 = pneg %p89
        $region22: #{tpu_custom_call.1} parent=15 // pred_check_branch
          %246 = sbr.rel (%p244) target = $region24
        $region23: #{tpu_custom_call.1} parent=15 // pred_region
          %s247 = sand.u32 %s79, 1
          %s248 = scalar_lea.sflag [#allocation7], %s247
          %s249 = sand.u32 %s79, 1
          %s250 = smul.addr %s249, 512
          %s251 = scalar_lea.vmem [#allocation6], %s250
          %s252 = smul.u32 64, %s29
          %s253 = smul.u32 2, %s28
          %s255 = ssub.s32 8192, 8192
          %256 = vsyncadd %s248, %s255
          %s257 = smul.addr %s252, 4
          %s258 = sadd.s32 %s253, %s257
          %s259 = smul.addr %s258, 64
          %s260 = scalar_lea.hbm %s1, %s259
          %s261 = sshll.u32 %s251, 4
          %s262 = int_to_ptr.vmem [resolvable:$true] %s261
          %267 = dma.hbm_to_vmem [thread:$0]  %s260, 8192, %s262, %s248, 256, 128, 8
        $region24: #{tpu_custom_call.1} parent=15 // pred_fallthru
          _
        // Predicated region
        $region25: #{tpu_custom_call.1} parent=15 // pred_check
          %p268 = pneg %p115
        $region26: #{tpu_custom_call.1} parent=15 // pred_check_branch
          %270 = sbr.rel (%p268) target = $region28
        $region27: #{tpu_custom_call.1} parent=15 // pred_region
          %s271 = smul.u32 2, %s28
          %p272 = scmp.lt.s32.totalorder %s271, 3
          %s273 = scalar_select %p272, %s271, 3
          %s274 = scalar_lea.vmem %s2, %s273
          %s275 = smul.u32 2, %s28
        $region28: #{tpu_custom_call.1} parent=15 // pred_fallthru
          _
        // Predicated region
        $region29: #{tpu_custom_call.1} parent=15 // pred_check
          %p276 = pneg %p141
        $region30: #{tpu_custom_call.1} parent=15 // pred_check_branch
          %278 = sbr.rel (%p276) target = $region32
        $region31: #{tpu_custom_call.1} parent=15 // pred_region
          %s279 = smul.u32 16, %s27
          %p280 = scmp.lt.s32.totalorder %s279, 31
          %s281 = scalar_select %p280, %s279, 31
          %s282 = smul.addr %s281, 4
          %s283 = scalar_lea.vmem %s3, %s282
          %s284 = smul.u32 16, %s27
        $region32: #{tpu_custom_call.1} parent=15 // pred_fallthru
          _
        // Predicated region
        $region33: #{tpu_custom_call.1} parent=15 // pred_check
          %p285 = pneg %p167
        $region34: #{tpu_custom_call.1} parent=15 // pred_check_branch
          %287 = sbr.rel (%p285) target = $region36
        $region35: #{tpu_custom_call.1} parent=15 // pred_region
          %s288 = smul.u32 2, %s28
          %p289 = scmp.lt.s32.totalorder %s288, 3
          %s290 = scalar_select %p289, %s288, 3
          %s291 = smul.addr %s290, 4
          %s292 = scalar_lea.vmem %s4, %s291
          %s293 = smul.u32 2, %s28
        $region36: #{tpu_custom_call.1} parent=15 // pred_fallthru
          _
      $region16: #{tpu_custom_call.1} parent=5 // pred_fallthru
        _
      %p294 = scmp.le.s32.totalorder 1, %s20
      %p295 = scmp.lt.s32.totalorder %s20, 9
      %p296 = pnand %p294, %p295
      %p297 = pneg %p296
      // Predicated region
      $region37: #{tpu_custom_call.1} parent=5 // pred_check
        _
      $region38: #{tpu_custom_call.1} parent=5 // pred_check_branch
        %299 = sbr.rel (%p296) target = $region40
      $region39: #{tpu_custom_call.1} parent=5 // pred_region
        %s300 = ssub.s32 %s20, 1
        %s301 = sand.u32 %s54, 1
        %s302 = scalar_lea.sflag [#allocation4], %s301
        %s303 = sand.u32 %s54, 1
        %s304 = smul.addr %s303, 256
        %s305 = scalar_lea.vmem [#allocation3], %s304
        // Predicated region
        $region41: #{tpu_custom_call.1} parent=39 // pred_check
          %p306 = pneg %p67
        $region42: #{tpu_custom_call.1} parent=39 // pred_check_branch
          %308 = sbr.rel (%p306) target = $region44
        $region43: #{tpu_custom_call.1} parent=39 // pred_region
          %309 = dma.done %s302, 4096
        $region44: #{tpu_custom_call.1} parent=39 // pred_fallthru
          _
        %s310 = sand.u32 %s82, 1
        %s311 = scalar_lea.sflag [#allocation7], %s310
        %s312 = sand.u32 %s82, 1
        %s313 = smul.addr %s312, 512
        %s314 = scalar_lea.vmem [#allocation6], %s313
        // Predicated region
        $region45: #{tpu_custom_call.1} parent=39 // pred_check
          %p315 = pneg %p95
        $region46: #{tpu_custom_call.1} parent=39 // pred_check_branch
          %317 = sbr.rel (%p315) target = $region48
        $region47: #{tpu_custom_call.1} parent=39 // pred_region
          %318 = dma.done %s311, 8192
        $region48: #{tpu_custom_call.1} parent=39 // pred_fallthru
          _
        %s319 = sand.u32 %s54, 1
        %s320 = scalar_lea.sflag [#allocation4], %s319
        %s321 = sand.u32 %s54, 1
        %s322 = smul.addr %s321, 256
        %s323 = scalar_lea.vmem [#allocation3], %s322
        %p324 = pneg %p67
        %p325 = pneg %p64
        %s326 = sand.u32 %s82, 1
        %s327 = scalar_lea.sflag [#allocation7], %s326
        %s328 = sand.u32 %s82, 1
        %s329 = smul.addr %s328, 512
        %s330 = scalar_lea.vmem [#allocation6], %s329
        %p331 = pneg %p95
        %p332 = pneg %p92
        %s333 = smul.u32 2, %s31
        %p334 = scmp.lt.s32.totalorder %s333, 3
        %s335 = scalar_select %p334, %s333, 3
        %s336 = scalar_lea.vmem %s2, %s335
        %p337 = pneg %p121
        %p338 = pneg %p118
        %s339 = smul.u32 16, %s30
        %p340 = scmp.lt.s32.totalorder %s339, 31
        %s341 = scalar_select %p340, %s339, 31
        %s342 = smul.addr %s341, 4
        %s343 = scalar_lea.vmem %s3, %s342
        %p344 = pneg %p147
        %p345 = pneg %p144
        %s346 = smul.u32 2, %s31
        %p347 = scmp.lt.s32.totalorder %s346, 3
        %s348 = scalar_select %p347, %s346, 3
        %s349 = smul.addr %s348, 4
        %s350 = scalar_lea.vmem %s4, %s349
        %p351 = pneg %p173
        %p352 = pneg %p170
        %p353 = pneg %p201
        %p354 = pneg %p198
        %s355 = sand.u32 %s188, 1
        %s356 = scalar_lea.sflag [#allocation5], %s355
        %s357 = sand.u32 %s188, 1
        %s358 = smul.addr %s357, 128
        %s359 = scalar_lea.vmem [#allocation8], %s358
        %s360 = smul.u32 16, %s30
        %s361 = smul.u32 4, %s32
        %s362 = smul.u32 64, %s32
        %s363 = smul.u32 2, %s31
        %s364 = smul.u32 2, %s31
        %p365 = scmp.lt.s32.totalorder %s364, 3
        %s366 = scalar_select %p365, %s364, 3
        %s367 = scalar_lea.vmem %s2, %s366
        %s368 = smul.u32 2, %s31
        %s369 = smul.u32 16, %s30
        %p370 = scmp.lt.s32.totalorder %s369, 31
        %s371 = scalar_select %p370, %s369, 31
        %s372 = smul.addr %s371, 4
        %s373 = scalar_lea.vmem %s3, %s372
        %s374 = smul.u32 16, %s30
        %s375 = smul.u32 2, %s31
        %p376 = scmp.lt.s32.totalorder %s375, 3
        %s377 = scalar_select %p376, %s375, 3
        %s378 = smul.addr %s377, 4
        %s379 = scalar_lea.vmem %s4, %s378
        %s380 = smul.u32 2, %s31
        %s381 = smul.u32 16, %s30
        %s382 = smul.u32 2, %s31
        %p384 = scmp.eq.s32.totalorder %s32, 0
        // Predicated region
        $region49: #{tpu_custom_call.1} parent=39 // pred_check
          %p385 = pneg %p384
        $region50: #{tpu_custom_call.1} parent=39 // pred_check_branch
          %387 = sbr.rel (%p385) target = $region52
        $region51: #{tpu_custom_call.1} parent=39 // pred_region
          %388 = vst [vmem:[#allocation2] sm:$0xff] 0.0
          %389 = vst [vmem:[#allocation2 + $0x8] sm:$0xff] 0.0
          %390 = vst [vmem:[#allocation2 + $0x10] sm:$0xff] 0.0
          %391 = vst [vmem:[#allocation2 + $0x18] sm:$0xff] 0.0
          %392 = vst [vmem:[#allocation2 + $0x20] sm:$0xff] 0.0
          %393 = vst [vmem:[#allocation2 + $0x28] sm:$0xff] 0.0
          %394 = vst [vmem:[#allocation2 + $0x30] sm:$0xff] 0.0
          %395 = vst [vmem:[#allocation2 + $0x38] sm:$0xff] 0.0
          %396 = vst [vmem:[#allocation2 + $0x40] sm:$0xff] 0.0
          %397 = vst [vmem:[#allocation2 + $0x48] sm:$0xff] 0.0
          %398 = vst [vmem:[#allocation2 + $0x50] sm:$0xff] 0.0
          %399 = vst [vmem:[#allocation2 + $0x58] sm:$0xff] 0.0
          %400 = vst [vmem:[#allocation2 + $0x60] sm:$0xff] 0.0
          %401 = vst [vmem:[#allocation2 + $0x68] sm:$0xff] 0.0
          %402 = vst [vmem:[#allocation2 + $0x70] sm:$0xff] 0.0
          %403 = vst [vmem:[#allocation2 + $0x78] sm:$0xff] 0.0
          %404 = vst [vmem:[#allocation2 + $0x80] sm:$0xff] 0.0
          %405 = vst [vmem:[#allocation2 + $0x88] sm:$0xff] 0.0
          %406 = vst [vmem:[#allocation2 + $0x90] sm:$0xff] 0.0
          %407 = vst [vmem:[#allocation2 + $0x98] sm:$0xff] 0.0
          %408 = vst [vmem:[#allocation2 + $0xa0] sm:$0xff] 0.0
          %409 = vst [vmem:[#allocation2 + $0xa8] sm:$0xff] 0.0
          %410 = vst [vmem:[#allocation2 + $0xb0] sm:$0xff] 0.0
          %411 = vst [vmem:[#allocation2 + $0xb8] sm:$0xff] 0.0
          %412 = vst [vmem:[#allocation2 + $0xc0] sm:$0xff] 0.0
          %413 = vst [vmem:[#allocation2 + $0xc8] sm:$0xff] 0.0
          %414 = vst [vmem:[#allocation2 + $0xd0] sm:$0xff] 0.0
          %415 = vst [vmem:[#allocation2 + $0xd8] sm:$0xff] 0.0
          %416 = vst [vmem:[#allocation2 + $0xe0] sm:$0xff] 0.0
          %417 = vst [vmem:[#allocation2 + $0xe8] sm:$0xff] 0.0
          %418 = vst [vmem:[#allocation2 + $0xf0] sm:$0xff] 0.0
          %419 = vst [vmem:[#allocation2 + $0xf8] sm:$0xff] 0.0
        $region52: #{tpu_custom_call.1} parent=39 // pred_fallthru
          _
        %v420 = vld [vmem:[#allocation2] sm:$0xff]
        %v421 = vld [vmem:[#allocation2 + $0x8] sm:$0xff]
        %v422 = vld [vmem:[#allocation2 + $0x10] sm:$0xff]
        %v423 = vld [vmem:[#allocation2 + $0x18] sm:$0xff]
        %v424 = vld [vmem:[#allocation2 + $0x20] sm:$0xff]
        %v425 = vld [vmem:[#allocation2 + $0x28] sm:$0xff]
        %v426 = vld [vmem:[#allocation2 + $0x30] sm:$0xff]
        %v427 = vld [vmem:[#allocation2 + $0x38] sm:$0xff]
        %v428 = vld [vmem:[#allocation2 + $0x40] sm:$0xff]
        %v429 = vld [vmem:[#allocation2 + $0x48] sm:$0xff]
        %v430 = vld [vmem:[#allocation2 + $0x50] sm:$0xff]
        %v431 = vld [vmem:[#allocation2 + $0x58] sm:$0xff]
        %v432 = vld [vmem:[#allocation2 + $0x60] sm:$0xff]
        %v433 = vld [vmem:[#allocation2 + $0x68] sm:$0xff]
        %v434 = vld [vmem:[#allocation2 + $0x70] sm:$0xff]
        %v435 = vld [vmem:[#allocation2 + $0x78] sm:$0xff]
        %v436 = vld [vmem:[#allocation2 + $0x80] sm:$0xff]
        %v437 = vld [vmem:[#allocation2 + $0x88] sm:$0xff]
        %v438 = vld [vmem:[#allocation2 + $0x90] sm:$0xff]
        %v439 = vld [vmem:[#allocation2 + $0x98] sm:$0xff]
        %v440 = vld [vmem:[#allocation2 + $0xa0] sm:$0xff]
        %v441 = vld [vmem:[#allocation2 + $0xa8] sm:$0xff]
        %v442 = vld [vmem:[#allocation2 + $0xb0] sm:$0xff]
        %v443 = vld [vmem:[#allocation2 + $0xb8] sm:$0xff]
        %v444 = vld [vmem:[#allocation2 + $0xc0] sm:$0xff]
        %v445 = vld [vmem:[#allocation2 + $0xc8] sm:$0xff]
        %v446 = vld [vmem:[#allocation2 + $0xd0] sm:$0xff]
        %v447 = vld [vmem:[#allocation2 + $0xd8] sm:$0xff]
        %v448 = vld [vmem:[#allocation2 + $0xe0] sm:$0xff]
        %v449 = vld [vmem:[#allocation2 + $0xe8] sm:$0xff]
        %v450 = vld [vmem:[#allocation2 + $0xf0] sm:$0xff]
        %v451 = vld [vmem:[#allocation2 + $0xf8] sm:$0xff]
        %v452 = vld [vmem:[%s305] sm:$0xff]
        %v453 = vld [vmem:[%s305 + $0x8] sm:$0xff]
        %v454 = vld [vmem:[%s305 + $0x10] sm:$0xff]
        %v455 = vld [vmem:[%s305 + $0x18] sm:$0xff]
        %v456 = vld [vmem:[%s305 + $0x20] sm:$0xff]
        %v457 = vld [vmem:[%s305 + $0x28] sm:$0xff]
        %v458 = vld [vmem:[%s305 + $0x30] sm:$0xff]
        %v459 = vld [vmem:[%s305 + $0x38] sm:$0xff]
        %v460 = vld [vmem:[%s305 + $0x40] sm:$0xff]
        %v461 = vld [vmem:[%s305 + $0x48] sm:$0xff]
        %v462 = vld [vmem:[%s305 + $0x50] sm:$0xff]
        %v463 = vld [vmem:[%s305 + $0x58] sm:$0xff]
        %v464 = vld [vmem:[%s305 + $0x60] sm:$0xff]
        %v465 = vld [vmem:[%s305 + $0x68] sm:$0xff]
        %v466 = vld [vmem:[%s305 + $0x70] sm:$0xff]
        %v467 = vld [vmem:[%s305 + $0x78] sm:$0xff]
        %v468 = vld [vmem:[%s305 + $0x80] sm:$0xff]
        %v469 = vld [vmem:[%s305 + $0x88] sm:$0xff]
        %v470 = vld [vmem:[%s305 + $0x90] sm:$0xff]
        %v471 = vld [vmem:[%s305 + $0x98] sm:$0xff]
        %v472 = vld [vmem:[%s305 + $0xa0] sm:$0xff]
        %v473 = vld [vmem:[%s305 + $0xa8] sm:$0xff]
        %v474 = vld [vmem:[%s305 + $0xb0] sm:$0xff]
        %v475 = vld [vmem:[%s305 + $0xb8] sm:$0xff]
        %v476 = vld [vmem:[%s305 + $0xc0] sm:$0xff]
        %v477 = vld [vmem:[%s305 + $0xc8] sm:$0xff]
        %v478 = vld [vmem:[%s305 + $0xd0] sm:$0xff]
        %v479 = vld [vmem:[%s305 + $0xd8] sm:$0xff]
        %v480 = vld [vmem:[%s305 + $0xe0] sm:$0xff]
        %v481 = vld [vmem:[%s305 + $0xe8] sm:$0xff]
        %v482 = vld [vmem:[%s305 + $0xf0] sm:$0xff]
        %v483 = vld [vmem:[%s305 + $0xf8] sm:$0xff]
        %v484 = vld [vmem:[%s314] sm:$0xff]
        %v485 = vld [vmem:[%s314 + $0x8] sm:$0xff]
        %v486 = vld [vmem:[%s314 + $0x10] sm:$0xff]
        %v487 = vld [vmem:[%s314 + $0x18] sm:$0xff]
        %v488 = vld [vmem:[%s314 + $0x20] sm:$0xff]
        %v489 = vld [vmem:[%s314 + $0x28] sm:$0xff]
        %v490 = vld [vmem:[%s314 + $0x30] sm:$0xff]
        %v491 = vld [vmem:[%s314 + $0x38] sm:$0xff]
        %v492 = vld [vmem:[%s314 + $0x40] sm:$0xff]
        %v493 = vld [vmem:[%s314 + $0x48] sm:$0xff]
        %v494 = vld [vmem:[%s314 + $0x50] sm:$0xff]
        %v495 = vld [vmem:[%s314 + $0x58] sm:$0xff]
        %v496 = vld [vmem:[%s314 + $0x60] sm:$0xff]
        %v497 = vld [vmem:[%s314 + $0x68] sm:$0xff]
        %v498 = vld [vmem:[%s314 + $0x70] sm:$0xff]
        %v499 = vld [vmem:[%s314 + $0x78] sm:$0xff]
        %v500 = vld [vmem:[%s314 + $0x80] sm:$0xff]
        %v501 = vld [vmem:[%s314 + $0x88] sm:$0xff]
        %v502 = vld [vmem:[%s314 + $0x90] sm:$0xff]
        %v503 = vld [vmem:[%s314 + $0x98] sm:$0xff]
        %v504 = vld [vmem:[%s314 + $0xa0] sm:$0xff]
        %v505 = vld [vmem:[%s314 + $0xa8] sm:$0xff]
        %v506 = vld [vmem:[%s314 + $0xb0] sm:$0xff]
        %v507 = vld [vmem:[%s314 + $0xb8] sm:$0xff]
        %v508 = vld [vmem:[%s314 + $0xc0] sm:$0xff]
        %v509 = vld [vmem:[%s314 + $0xc8] sm:$0xff]
        %v510 = vld [vmem:[%s314 + $0xd0] sm:$0xff]
        %v511 = vld [vmem:[%s314 + $0xd8] sm:$0xff]
        %v512 = vld [vmem:[%s314 + $0xe0] sm:$0xff]
        %v513 = vld [vmem:[%s314 + $0xe8] sm:$0xff]
        %v514 = vld [vmem:[%s314 + $0xf0] sm:$0xff]
        %v515 = vld [vmem:[%s314 + $0xf8] sm:$0xff]
        %v516 = vld [vmem:[%s314 + $0x100] sm:$0xff]
        %v517 = vld [vmem:[%s314 + $0x108] sm:$0xff]
        %v518 = vld [vmem:[%s314 + $0x110] sm:$0xff]
        %v519 = vld [vmem:[%s314 + $0x118] sm:$0xff]
        %v520 = vld [vmem:[%s314 + $0x120] sm:$0xff]
        %v521 = vld [vmem:[%s314 + $0x128] sm:$0xff]
        %v522 = vld [vmem:[%s314 + $0x130] sm:$0xff]
        %v523 = vld [vmem:[%s314 + $0x138] sm:$0xff]
        %v524 = vld [vmem:[%s314 + $0x140] sm:$0xff]
        %v525 = vld [vmem:[%s314 + $0x148] sm:$0xff]
        %v526 = vld [vmem:[%s314 + $0x150] sm:$0xff]
        %v527 = vld [vmem:[%s314 + $0x158] sm:$0xff]
        %v528 = vld [vmem:[%s314 + $0x160] sm:$0xff]
        %v529 = vld [vmem:[%s314 + $0x168] sm:$0xff]
        %v530 = vld [vmem:[%s314 + $0x170] sm:$0xff]
        %v531 = vld [vmem:[%s314 + $0x178] sm:$0xff]
        %v532 = vld [vmem:[%s314 + $0x180] sm:$0xff]
        %v533 = vld [vmem:[%s314 + $0x188] sm:$0xff]
        %v534 = vld [vmem:[%s314 + $0x190] sm:$0xff]
        %v535 = vld [vmem:[%s314 + $0x198] sm:$0xff]
        %v536 = vld [vmem:[%s314 + $0x1a0] sm:$0xff]
        %v537 = vld [vmem:[%s314 + $0x1a8] sm:$0xff]
        %v538 = vld [vmem:[%s314 + $0x1b0] sm:$0xff]
        %v539 = vld [vmem:[%s314 + $0x1b8] sm:$0xff]
        %v540 = vld [vmem:[%s314 + $0x1c0] sm:$0xff]
        %v541 = vld [vmem:[%s314 + $0x1c8] sm:$0xff]
        %v542 = vld [vmem:[%s314 + $0x1d0] sm:$0xff]
        %v543 = vld [vmem:[%s314 + $0x1d8] sm:$0xff]
        %v544 = vld [vmem:[%s314 + $0x1e0] sm:$0xff]
        %v545 = vld [vmem:[%s314 + $0x1e8] sm:$0xff]
        %v546 = vld [vmem:[%s314 + $0x1f0] sm:$0xff]
        %v547 = vld [vmem:[%s314 + $0x1f8] sm:$0xff]
        %v580 = vunpack.c.l.b16 %v452
        %v581 = vunpack.c.h.b16 %v452
        %v582 = vunpack.c.l.b16 %v453
        %v583 = vunpack.c.h.b16 %v453
        %v584 = vunpack.c.l.b16 %v454
        %v585 = vunpack.c.h.b16 %v454
        %v586 = vunpack.c.l.b16 %v455
        %v587 = vunpack.c.h.b16 %v455
        %v588 = vunpack.c.l.b16 %v456
        %v589 = vunpack.c.h.b16 %v456
        %v590 = vunpack.c.l.b16 %v457
        %v591 = vunpack.c.h.b16 %v457
        %v592 = vunpack.c.l.b16 %v458
        %v593 = vunpack.c.h.b16 %v458
        %v594 = vunpack.c.l.b16 %v459
        %v595 = vunpack.c.h.b16 %v459
        %v596 = vunpack.c.l.b16 %v460
        %v597 = vunpack.c.h.b16 %v460
        %v598 = vunpack.c.l.b16 %v461
        %v599 = vunpack.c.h.b16 %v461
        %v600 = vunpack.c.l.b16 %v462
        %v601 = vunpack.c.h.b16 %v462
        %v602 = vunpack.c.l.b16 %v463
        %v603 = vunpack.c.h.b16 %v463
        %v604 = vunpack.c.l.b16 %v464
        %v605 = vunpack.c.h.b16 %v464
        %v606 = vunpack.c.l.b16 %v465
        %v607 = vunpack.c.h.b16 %v465
        %v608 = vunpack.c.l.b16 %v466
        %v609 = vunpack.c.h.b16 %v466
        %v610 = vunpack.c.l.b16 %v467
        %v611 = vunpack.c.h.b16 %v467
        %v612 = vunpack.c.l.b16 %v468
        %v613 = vunpack.c.h.b16 %v468
        %v614 = vunpack.c.l.b16 %v469
        %v615 = vunpack.c.h.b16 %v469
        %v616 = vunpack.c.l.b16 %v470
        %v617 = vunpack.c.h.b16 %v470
        %v618 = vunpack.c.l.b16 %v471
        %v619 = vunpack.c.h.b16 %v471
        %v620 = vunpack.c.l.b16 %v472
        %v621 = vunpack.c.h.b16 %v472
        %v622 = vunpack.c.l.b16 %v473
        %v623 = vunpack.c.h.b16 %v473
        %v624 = vunpack.c.l.b16 %v474
        %v625 = vunpack.c.h.b16 %v474
        %v626 = vunpack.c.l.b16 %v475
        %v627 = vunpack.c.h.b16 %v475
        %v628 = vunpack.c.l.b16 %v476
        %v629 = vunpack.c.h.b16 %v476
        %v630 = vunpack.c.l.b16 %v477
        %v631 = vunpack.c.h.b16 %v477
        %v632 = vunpack.c.l.b16 %v478
        %v633 = vunpack.c.h.b16 %v478
        %v634 = vunpack.c.l.b16 %v479
        %v635 = vunpack.c.h.b16 %v479
        %v636 = vunpack.c.l.b16 %v480
        %v637 = vunpack.c.h.b16 %v480
        %v638 = vunpack.c.l.b16 %v481
        %v639 = vunpack.c.h.b16 %v481
        %v640 = vunpack.c.l.b16 %v482
        %v641 = vunpack.c.h.b16 %v482
        %v642 = vunpack.c.l.b16 %v483
        %v643 = vunpack.c.h.b16 %v483
        %v644 = vpack.c.b16 %v584, %v580
        %v645 = vpack.c.b16 %v585, %v581
        %v646 = vpack.c.b16 %v586, %v582
        %v647 = vpack.c.b16 %v587, %v583
        %v648 = vpack.c.b16 %v592, %v588
        %v649 = vpack.c.b16 %v593, %v589
        %v650 = vpack.c.b16 %v594, %v590
        %v651 = vpack.c.b16 %v595, %v591
        %v652 = vpack.c.b16 %v600, %v596
        %v653 = vpack.c.b16 %v601, %v597
        %v654 = vpack.c.b16 %v602, %v598
        %v655 = vpack.c.b16 %v603, %v599
        %v656 = vpack.c.b16 %v608, %v604
        %v657 = vpack.c.b16 %v609, %v605
        %v658 = vpack.c.b16 %v610, %v606
        %v659 = vpack.c.b16 %v611, %v607
        %v660 = vpack.c.b16 %v616, %v612
        %v661 = vpack.c.b16 %v617, %v613
        %v662 = vpack.c.b16 %v618, %v614
        %v663 = vpack.c.b16 %v619, %v615
        %v664 = vpack.c.b16 %v624, %v620
        %v665 = vpack.c.b16 %v625, %v621
        %v666 = vpack.c.b16 %v626, %v622
        %v667 = vpack.c.b16 %v627, %v623
        %v668 = vpack.c.b16 %v632, %v628
        %v669 = vpack.c.b16 %v633, %v629
        %v670 = vpack.c.b16 %v634, %v630
        %v671 = vpack.c.b16 %v635, %v631
        %v672 = vpack.c.b16 %v640, %v636
        %v673 = vpack.c.b16 %v641, %v637
        %v674 = vpack.c.b16 %v642, %v638
        %v675 = vpack.c.b16 %v643, %v639
        %v772 = vunpack.c.l.b16 %v484
        %v773 = vunpack.c.h.b16 %v484
        %v774 = vunpack.c.l.b16 %v485
        %v775 = vunpack.c.h.b16 %v485
        %v776 = vunpack.c.l.b16 %v486
        %v777 = vunpack.c.h.b16 %v486
        %v778 = vunpack.c.l.b16 %v487
        %v779 = vunpack.c.h.b16 %v487
        %v780 = vunpack.c.l.b16 %v488
        %v781 = vunpack.c.h.b16 %v488
        %v782 = vunpack.c.l.b16 %v489
        %v783 = vunpack.c.h.b16 %v489
        %v784 = vunpack.c.l.b16 %v490
        %v785 = vunpack.c.h.b16 %v490
        %v786 = vunpack.c.l.b16 %v491
        %v787 = vunpack.c.h.b16 %v491
        %v788 = vunpack.c.l.b16 %v492
        %v789 = vunpack.c.h.b16 %v492
        %v790 = vunpack.c.l.b16 %v493
        %v791 = vunpack.c.h.b16 %v493
        %v792 = vunpack.c.l.b16 %v494
        %v793 = vunpack.c.h.b16 %v494
        %v794 = vunpack.c.l.b16 %v495
        %v795 = vunpack.c.h.b16 %v495
        %v796 = vunpack.c.l.b16 %v496
        %v797 = vunpack.c.h.b16 %v496
        %v798 = vunpack.c.l.b16 %v497
        %v799 = vunpack.c.h.b16 %v497
        %v800 = vunpack.c.l.b16 %v498
        %v801 = vunpack.c.h.b16 %v498
        %v802 = vunpack.c.l.b16 %v499
        %v803 = vunpack.c.h.b16 %v499
        %v804 = vunpack.c.l.b16 %v500
        %v805 = vunpack.c.h.b16 %v500
        %v806 = vunpack.c.l.b16 %v501
        %v807 = vunpack.c.h.b16 %v501
        %v808 = vunpack.c.l.b16 %v502
        %v809 = vunpack.c.h.b16 %v502
        %v810 = vunpack.c.l.b16 %v503
        %v811 = vunpack.c.h.b16 %v503
        %v812 = vunpack.c.l.b16 %v504
        %v813 = vunpack.c.h.b16 %v504
        %v814 = vunpack.c.l.b16 %v505
        %v815 = vunpack.c.h.b16 %v505
        %v816 = vunpack.c.l.b16 %v506
        %v817 = vunpack.c.h.b16 %v506
        %v818 = vunpack.c.l.b16 %v507
        %v819 = vunpack.c.h.b16 %v507
        %v820 = vunpack.c.l.b16 %v508
        %v821 = vunpack.c.h.b16 %v508
        %v822 = vunpack.c.l.b16 %v509
        %v823 = vunpack.c.h.b16 %v509
        %v824 = vunpack.c.l.b16 %v510
        %v825 = vunpack.c.h.b16 %v510
        %v826 = vunpack.c.l.b16 %v511
        %v827 = vunpack.c.h.b16 %v511
        %v828 = vunpack.c.l.b16 %v512
        %v829 = vunpack.c.h.b16 %v512
        %v830 = vunpack.c.l.b16 %v513
        %v831 = vunpack.c.h.b16 %v513
        %v832 = vunpack.c.l.b16 %v514
        %v833 = vunpack.c.h.b16 %v514
        %v834 = vunpack.c.l.b16 %v515
        %v835 = vunpack.c.h.b16 %v515
        %v836 = vunpack.c.l.b16 %v516
        %v837 = vunpack.c.h.b16 %v516
        %v838 = vunpack.c.l.b16 %v517
        %v839 = vunpack.c.h.b16 %v517
        %v840 = vunpack.c.l.b16 %v518
        %v841 = vunpack.c.h.b16 %v518
        %v842 = vunpack.c.l.b16 %v519
        %v843 = vunpack.c.h.b16 %v519
        %v844 = vunpack.c.l.b16 %v520
        %v845 = vunpack.c.h.b16 %v520
        %v846 = vunpack.c.l.b16 %v521
        %v847 = vunpack.c.h.b16 %v521
        %v848 = vunpack.c.l.b16 %v522
        %v849 = vunpack.c.h.b16 %v522
        %v850 = vunpack.c.l.b16 %v523
        %v851 = vunpack.c.h.b16 %v523
        %v852 = vunpack.c.l.b16 %v524
        %v853 = vunpack.c.h.b16 %v524
        %v854 = vunpack.c.l.b16 %v525
        %v855 = vunpack.c.h.b16 %v525
        %v856 = vunpack.c.l.b16 %v526
        %v857 = vunpack.c.h.b16 %v526
        %v858 = vunpack.c.l.b16 %v527
        %v859 = vunpack.c.h.b16 %v527
        %v860 = vunpack.c.l.b16 %v528
        %v861 = vunpack.c.h.b16 %v528
        %v862 = vunpack.c.l.b16 %v529
        %v863 = vunpack.c.h.b16 %v529
        %v864 = vunpack.c.l.b16 %v530
        %v865 = vunpack.c.h.b16 %v530
        %v866 = vunpack.c.l.b16 %v531
        %v867 = vunpack.c.h.b16 %v531
        %v868 = vunpack.c.l.b16 %v532
        %v869 = vunpack.c.h.b16 %v532
        %v870 = vunpack.c.l.b16 %v533
        %v871 = vunpack.c.h.b16 %v533
        %v872 = vunpack.c.l.b16 %v534
        %v873 = vunpack.c.h.b16 %v534
        %v874 = vunpack.c.l.b16 %v535
        %v875 = vunpack.c.h.b16 %v535
        %v876 = vunpack.c.l.b16 %v536
        %v877 = vunpack.c.h.b16 %v536
        %v878 = vunpack.c.l.b16 %v537
        %v879 = vunpack.c.h.b16 %v537
        %v880 = vunpack.c.l.b16 %v538
        %v881 = vunpack.c.h.b16 %v538
        %v882 = vunpack.c.l.b16 %v539
        %v883 = vunpack.c.h.b16 %v539
        %v884 = vunpack.c.l.b16 %v540
        %v885 = vunpack.c.h.b16 %v540
        %v886 = vunpack.c.l.b16 %v541
        %v887 = vunpack.c.h.b16 %v541
        %v888 = vunpack.c.l.b16 %v542
        %v889 = vunpack.c.h.b16 %v542
        %v890 = vunpack.c.l.b16 %v543
        %v891 = vunpack.c.h.b16 %v543
        %v892 = vunpack.c.l.b16 %v544
        %v893 = vunpack.c.h.b16 %v544
        %v894 = vunpack.c.l.b16 %v545
        %v895 = vunpack.c.h.b16 %v545
        %v896 = vunpack.c.l.b16 %v546
        %v897 = vunpack.c.h.b16 %v546
        %v898 = vunpack.c.l.b16 %v547
        %v899 = vunpack.c.h.b16 %v547
        %v900 = vpack.c.b16 %v774, %v772
        %v901 = vpack.c.b16 %v775, %v773
        %v902 = vpack.c.b16 %v778, %v776
        %v903 = vpack.c.b16 %v779, %v777
        %v904 = vpack.c.b16 %v782, %v780
        %v905 = vpack.c.b16 %v783, %v781
        %v906 = vpack.c.b16 %v786, %v784
        %v907 = vpack.c.b16 %v787, %v785
        %v908 = vpack.c.b16 %v790, %v788
        %v909 = vpack.c.b16 %v791, %v789
        %v910 = vpack.c.b16 %v794, %v792
        %v911 = vpack.c.b16 %v795, %v793
        %v912 = vpack.c.b16 %v798, %v796
        %v913 = vpack.c.b16 %v799, %v797
        %v914 = vpack.c.b16 %v802, %v800
        %v915 = vpack.c.b16 %v803, %v801
        %v916 = vpack.c.b16 %v806, %v804
        %v917 = vpack.c.b16 %v807, %v805
        %v918 = vpack.c.b16 %v810, %v808
        %v919 = vpack.c.b16 %v811, %v809
        %v920 = vpack.c.b16 %v814, %v812
        %v921 = vpack.c.b16 %v815, %v813
        %v922 = vpack.c.b16 %v818, %v816
        %v923 = vpack.c.b16 %v819, %v817
        %v924 = vpack.c.b16 %v822, %v820
        %v925 = vpack.c.b16 %v823, %v821
        %v926 = vpack.c.b16 %v826, %v824
        %v927 = vpack.c.b16 %v827, %v825
        %v928 = vpack.c.b16 %v830, %v828
        %v929 = vpack.c.b16 %v831, %v829
        %v930 = vpack.c.b16 %v834, %v832
        %v931 = vpack.c.b16 %v835, %v833
        %v932 = vpack.c.b16 %v838, %v836
        %v933 = vpack.c.b16 %v839, %v837
        %v934 = vpack.c.b16 %v842, %v840
        %v935 = vpack.c.b16 %v843, %v841
        %v936 = vpack.c.b16 %v846, %v844
        %v937 = vpack.c.b16 %v847, %v845
        %v938 = vpack.c.b16 %v850, %v848
        %v939 = vpack.c.b16 %v851, %v849
        %v940 = vpack.c.b16 %v854, %v852
        %v941 = vpack.c.b16 %v855, %v853
        %v942 = vpack.c.b16 %v858, %v856
        %v943 = vpack.c.b16 %v859, %v857
        %v944 = vpack.c.b16 %v862, %v860
        %v945 = vpack.c.b16 %v863, %v861
        %v946 = vpack.c.b16 %v866, %v864
        %v947 = vpack.c.b16 %v867, %v865
        %v948 = vpack.c.b16 %v870, %v868
        %v949 = vpack.c.b16 %v871, %v869
        %v950 = vpack.c.b16 %v874, %v872
        %v951 = vpack.c.b16 %v875, %v873
        %v952 = vpack.c.b16 %v878, %v876
        %v953 = vpack.c.b16 %v879, %v877
        %v954 = vpack.c.b16 %v882, %v880
        %v955 = vpack.c.b16 %v883, %v881
        %v956 = vpack.c.b16 %v886, %v884
        %v957 = vpack.c.b16 %v887, %v885
        %v958 = vpack.c.b16 %v890, %v888
        %v959 = vpack.c.b16 %v891, %v889
        %v960 = vpack.c.b16 %v894, %v892
        %v961 = vpack.c.b16 %v895, %v893
        %v962 = vpack.c.b16 %v898, %v896
        %v963 = vpack.c.b16 %v899, %v897
        %1028 = vmatprep.subr.bf16.mxu0 %v901
        %1029 = vmatpush1.bf16.msra.mxu0 %v900
        %1030 = vmatprep.subr.bf16.mxu0 %v903
        %1031 = vmatpush1.bf16.msra.mxu0 %v902
        %1032 = vmatprep.subr.bf16.mxu0 %v905
        %1033 = vmatpush1.bf16.msra.mxu0 %v904
        %1034 = vmatprep.subr.bf16.mxu0 %v907
        %1035 = vmatpush1.bf16.msra.mxu0 %v906
        %1036 = vmatprep.subr.bf16.mxu0 %v909
        %1037 = vmatpush1.bf16.msra.mxu0 %v908
        %1038 = vmatprep.subr.bf16.mxu0 %v911
        %1039 = vmatpush1.bf16.msra.mxu0 %v910
        %1040 = vmatprep.subr.bf16.mxu0 %v913
        %1041 = vmatpush1.bf16.msra.mxu0 %v912
        %1042 = vmatprep.subr.bf16.mxu0 %v915
        %1043 = vmatpush1.bf16.msra.mxu0 %v914
        %1044 = vmatprep.subr.bf16.mxu0 %v917
        %1045 = vmatpush1.bf16.msra.mxu0 %v916
        %1046 = vmatprep.subr.bf16.mxu0 %v919
        %1047 = vmatpush1.bf16.msra.mxu0 %v918
        %1048 = vmatprep.subr.bf16.mxu0 %v921
        %1049 = vmatpush1.bf16.msra.mxu0 %v920
        %1050 = vmatprep.subr.bf16.mxu0 %v923
        %1051 = vmatpush1.bf16.msra.mxu0 %v922
        %1052 = vmatprep.subr.bf16.mxu0 %v925
        %1053 = vmatpush1.bf16.msra.mxu0 %v924
        %1054 = vmatprep.subr.bf16.mxu0 %v927
        %1055 = vmatpush1.bf16.msra.mxu0 %v926
        %1056 = vmatprep.subr.bf16.mxu0 %v929
        %1057 = vmatpush1.bf16.msra.mxu0 %v928
        %1058 = vmatprep.subr.bf16.mxu0 %v931
        %1059 = vmatpush1.bf16.msra.mxu0 %v930
        %1060 = vmatprep.mubr.bf16.mxu0 %v645
        %1061 = vmatmul.mubr.bf16.gmra.mrb[0].mxu0 %v644
        %v1062 = vpop.f32.mrb[0].mxu0
        %v1063 = vadd.f32 0.0, %v1062
        %v1064 = vpop.f32.mrb[0].mxu0
        %v1065 = vadd.f32 0.0, %v1064
        %v1066 = vpop.f32.mrb[0].mxu0
        %v1067 = vadd.f32 0.0, %v1066
        %v1068 = vpop.f32.mrb[0].mxu0
        %v1069 = vadd.f32 0.0, %v1068
        %1070 = vmatprep.mubr.bf16.mxu0 %v649
        %1071 = vmatmul.mubr.bf16.gmra.mrb[0].mxu0 %v648
        %v1072 = vpop.f32.mrb[0].mxu0
        %v1073 = vadd.f32 0.0, %v1072
        %v1074 = vpop.f32.mrb[0].mxu0
        %v1075 = vadd.f32 0.0, %v1074
        %v1076 = vpop.f32.mrb[0].mxu0
        %v1077 = vadd.f32 0.0, %v1076
        %v1078 = vpop.f32.mrb[0].mxu0
        %v1079 = vadd.f32 0.0, %v1078
        %1080 = vmatprep.mubr.bf16.mxu0 %v653
        %1081 = vmatmul.mubr.bf16.gmra.mrb[0].mxu0 %v652
        %v1082 = vpop.f32.mrb[0].mxu0
        %v1083 = vadd.f32 0.0, %v1082
        %v1084 = vpop.f32.mrb[0].mxu0
        %v1085 = vadd.f32 0.0, %v1084
        %v1086 = vpop.f32.mrb[0].mxu0
        %v1087 = vadd.f32 0.0, %v1086
        %v1088 = vpop.f32.mrb[0].mxu0
        %v1089 = vadd.f32 0.0, %v1088
        %1090 = vmatprep.mubr.bf16.mxu0 %v657
        %1091 = vmatmul.mubr.bf16.gmra.mrb[0].mxu0 %v656
        %v1092 = vpop.f32.mrb[0].mxu0
        %v1093 = vadd.f32 0.0, %v1092
        %v1094 = vpop.f32.mrb[0].mxu0
        %v1095 = vadd.f32 0.0, %v1094
        %v1096 = vpop.f32.mrb[0].mxu0
        %v1097 = vadd.f32 0.0, %v1096
        %v1098 = vpop.f32.mrb[0].mxu0
        %v1099 = vadd.f32 0.0, %v1098
        %1100 = vmatprep.mubr.bf16.mxu0 %v661
        %1101 = vmatmul.mubr.bf16.gmra.mrb[0].mxu0 %v660
        %v1102 = vpop.f32.mrb[0].mxu0
        %v1103 = vadd.f32 0.0, %v1102
        %v1104 = vpop.f32.mrb[0].mxu0
        %v1105 = vadd.f32 0.0, %v1104
        %v1106 = vpop.f32.mrb[0].mxu0
        %v1107 = vadd.f32 0.0, %v1106
        %v1108 = vpop.f32.mrb[0].mxu0
        %v1109 = vadd.f32 0.0, %v1108
        %1110 = vmatprep.mubr.bf16.mxu0 %v665
        %1111 = vmatmul.mubr.bf16.gmra.mrb[0].mxu0 %v664
        %v1112 = vpop.f32.mrb[0].mxu0
        %v1113 = vadd.f32 0.0, %v1112
        %v1114 = vpop.f32.mrb[0].mxu0
        %v1115 = vadd.f32 0.0, %v1114
        %v1116 = vpop.f32.mrb[0].mxu0
        %v1117 = vadd.f32 0.0, %v1116
        %v1118 = vpop.f32.mrb[0].mxu0
        %v1119 = vadd.f32 0.0, %v1118
        %1120 = vmatprep.mubr.bf16.mxu0 %v669
        %1121 = vmatmul.mubr.bf16.gmra.mrb[0].mxu0 %v668
        %v1122 = vpop.f32.mrb[0].mxu0
        %v1123 = vadd.f32 0.0, %v1122
        %v1124 = vpop.f32.mrb[0].mxu0
        %v1125 = vadd.f32 0.0, %v1124
        %v1126 = vpop.f32.mrb[0].mxu0
        %v1127 = vadd.f32 0.0, %v1126
        %v1128 = vpop.f32.mrb[0].mxu0
        %v1129 = vadd.f32 0.0, %v1128
        %1130 = vmatprep.mubr.bf16.mxu0 %v673
        %1131 = vmatmul.mubr.bf16.gmra.mrb[0].mxu0 %v672
        %v1132 = vpop.f32.mrb[0].mxu0
        %v1133 = vadd.f32 0.0, %v1132
        %v1134 = vpop.f32.mrb[0].mxu0
        %v1135 = vadd.f32 0.0, %v1134
        %v1136 = vpop.f32.mrb[0].mxu0
        %v1137 = vadd.f32 0.0, %v1136
        %v1138 = vpop.f32.mrb[0].mxu0
        %v1139 = vadd.f32 0.0, %v1138
        %1140 = vdwg.mxu0
        %1141 = vmatprep.subr.bf16.mxu0 %v933
        %1142 = vmatpush1.bf16.msra.mxu0 %v932
        %1143 = vmatprep.subr.bf16.mxu0 %v935
        %1144 = vmatpush1.bf16.msra.mxu0 %v934
        %1145 = vmatprep.subr.bf16.mxu0 %v937
        %1146 = vmatpush1.bf16.msra.mxu0 %v936
        %1147 = vmatprep.subr.bf16.mxu0 %v939
        %1148 = vmatpush1.bf16.msra.mxu0 %v938
        %1149 = vmatprep.subr.bf16.mxu0 %v941
        %1150 = vmatpush1.bf16.msra.mxu0 %v940
        %1151 = vmatprep.subr.bf16.mxu0 %v943
        %1152 = vmatpush1.bf16.msra.mxu0 %v942
        %1153 = vmatprep.subr.bf16.mxu0 %v945
        %1154 = vmatpush1.bf16.msra.mxu0 %v944
        %1155 = vmatprep.subr.bf16.mxu0 %v947
        %1156 = vmatpush1.bf16.msra.mxu0 %v946
        %1157 = vmatprep.subr.bf16.mxu0 %v949
        %1158 = vmatpush1.bf16.msra.mxu0 %v948
        %1159 = vmatprep.subr.bf16.mxu0 %v951
        %1160 = vmatpush1.bf16.msra.mxu0 %v950
        %1161 = vmatprep.subr.bf16.mxu0 %v953
        %1162 = vmatpush1.bf16.msra.mxu0 %v952
        %1163 = vmatprep.subr.bf16.mxu0 %v955
        %1164 = vmatpush1.bf16.msra.mxu0 %v954
        %1165 = vmatprep.subr.bf16.mxu0 %v957
        %1166 = vmatpush1.bf16.msra.mxu0 %v956
        %1167 = vmatprep.subr.bf16.mxu0 %v959
        %1168 = vmatpush1.bf16.msra.mxu0 %v958
        %1169 = vmatprep.subr.bf16.mxu0 %v961
        %1170 = vmatpush1.bf16.msra.mxu0 %v960
        %1171 = vmatprep.subr.bf16.mxu0 %v963
        %1172 = vmatpush1.bf16.msra.mxu0 %v962
        %1173 = vmatprep.mubr.bf16.mxu0 %v647
        %1174 = vmatmul.mubr.bf16.gmra.mrb[0].mxu0 %v646
        %v1175 = vpop.f32.mrb[0].mxu0
        %v1176 = vadd.f32 %v1063, %v1175
        %v1177 = vpop.f32.mrb[0].mxu0
        %v1178 = vadd.f32 %v1065, %v1177
        %v1179 = vpop.f32.mrb[0].mxu0
        %v1180 = vadd.f32 %v1067, %v1179
        %v1181 = vpop.f32.mrb[0].mxu0
        %v1182 = vadd.f32 %v1069, %v1181
        %1183 = vmatprep.mubr.bf16.mxu0 %v651
        %1184 = vmatmul.mubr.bf16.gmra.mrb[0].mxu0 %v650
        %v1185 = vpop.f32.mrb[0].mxu0
        %v1186 = vadd.f32 %v1073, %v1185
        %v1187 = vpop.f32.mrb[0].mxu0
        %v1188 = vadd.f32 %v1075, %v1187
        %v1189 = vpop.f32.mrb[0].mxu0
        %v1190 = vadd.f32 %v1077, %v1189
        %v1191 = vpop.f32.mrb[0].mxu0
        %v1192 = vadd.f32 %v1079, %v1191
        %1193 = vmatprep.mubr.bf16.mxu0 %v655
        %1194 = vmatmul.mubr.bf16.gmra.mrb[0].mxu0 %v654
        %v1195 = vpop.f32.mrb[0].mxu0
        %v1196 = vadd.f32 %v1083, %v1195
        %v1197 = vpop.f32.mrb[0].mxu0
        %v1198 = vadd.f32 %v1085, %v1197
        %v1199 = vpop.f32.mrb[0].mxu0
        %v1200 = vadd.f32 %v1087, %v1199
        %v1201 = vpop.f32.mrb[0].mxu0
        %v1202 = vadd.f32 %v1089, %v1201
        %1203 = vmatprep.mubr.bf16.mxu0 %v659
        %1204 = vmatmul.mubr.bf16.gmra.mrb[0].mxu0 %v658
        %v1205 = vpop.f32.mrb[0].mxu0
        %v1206 = vadd.f32 %v1093, %v1205
        %v1207 = vpop.f32.mrb[0].mxu0
        %v1208 = vadd.f32 %v1095, %v1207
        %v1209 = vpop.f32.mrb[0].mxu0
        %v1210 = vadd.f32 %v1097, %v1209
        %v1211 = vpop.f32.mrb[0].mxu0
        %v1212 = vadd.f32 %v1099, %v1211
        %1213 = vmatprep.mubr.bf16.mxu0 %v663
        %1214 = vmatmul.mubr.bf16.gmra.mrb[0].mxu0 %v662
        %v1215 = vpop.f32.mrb[0].mxu0
        %v1216 = vadd.f32 %v1103, %v1215
        %v1217 = vpop.f32.mrb[0].mxu0
        %v1218 = vadd.f32 %v1105, %v1217
        %v1219 = vpop.f32.mrb[0].mxu0
        %v1220 = vadd.f32 %v1107, %v1219
        %v1221 = vpop.f32.mrb[0].mxu0
        %v1222 = vadd.f32 %v1109, %v1221
        %1223 = vmatprep.mubr.bf16.mxu0 %v667
        %1224 = vmatmul.mubr.bf16.gmra.mrb[0].mxu0 %v666
        %v1225 = vpop.f32.mrb[0].mxu0
        %v1226 = vadd.f32 %v1113, %v1225
        %v1227 = vpop.f32.mrb[0].mxu0
        %v1228 = vadd.f32 %v1115, %v1227
        %v1229 = vpop.f32.mrb[0].mxu0
        %v1230 = vadd.f32 %v1117, %v1229
        %v1231 = vpop.f32.mrb[0].mxu0
        %v1232 = vadd.f32 %v1119, %v1231
        %1233 = vmatprep.mubr.bf16.mxu0 %v671
        %1234 = vmatmul.mubr.bf16.gmra.mrb[0].mxu0 %v670
        %v1235 = vpop.f32.mrb[0].mxu0
        %v1236 = vadd.f32 %v1123, %v1235
        %v1237 = vpop.f32.mrb[0].mxu0
        %v1238 = vadd.f32 %v1125, %v1237
        %v1239 = vpop.f32.mrb[0].mxu0
        %v1240 = vadd.f32 %v1127, %v1239
        %v1241 = vpop.f32.mrb[0].mxu0
        %v1242 = vadd.f32 %v1129, %v1241
        %1243 = vmatprep.mubr.bf16.mxu0 %v675
        %1244 = vmatmul.mubr.bf16.gmra.mrb[0].mxu0 %v674
        %v1245 = vpop.f32.mrb[0].mxu0
        %v1246 = vadd.f32 %v1133, %v1245
        %v1247 = vpop.f32.mrb[0].mxu0
        %v1248 = vadd.f32 %v1135, %v1247
        %v1249 = vpop.f32.mrb[0].mxu0
        %v1250 = vadd.f32 %v1137, %v1249
        %v1251 = vpop.f32.mrb[0].mxu0
        %v1252 = vadd.f32 %v1139, %v1251
        %1253 = vdwg.mxu0
        %v1254 = vadd.f32 %v420, %v1176
        %v1255 = vadd.f32 %v421, %v1178
        %v1256 = vadd.f32 %v422, %v1180
        %v1257 = vadd.f32 %v423, %v1182
        %v1258 = vadd.f32 %v424, %v1186
        %v1259 = vadd.f32 %v425, %v1188
        %v1260 = vadd.f32 %v426, %v1190
        %v1261 = vadd.f32 %v427, %v1192
        %v1262 = vadd.f32 %v428, %v1196
        %v1263 = vadd.f32 %v429, %v1198
        %v1264 = vadd.f32 %v430, %v1200
        %v1265 = vadd.f32 %v431, %v1202
        %v1266 = vadd.f32 %v432, %v1206
        %v1267 = vadd.f32 %v433, %v1208
        %v1268 = vadd.f32 %v434, %v1210
        %v1269 = vadd.f32 %v435, %v1212
        %v1270 = vadd.f32 %v436, %v1216
        %v1271 = vadd.f32 %v437, %v1218
        %v1272 = vadd.f32 %v438, %v1220
        %v1273 = vadd.f32 %v439, %v1222
        %v1274 = vadd.f32 %v440, %v1226
        %v1275 = vadd.f32 %v441, %v1228
        %v1276 = vadd.f32 %v442, %v1230
        %v1277 = vadd.f32 %v443, %v1232
        %v1278 = vadd.f32 %v444, %v1236
        %v1279 = vadd.f32 %v445, %v1238
        %v1280 = vadd.f32 %v446, %v1240
        %v1281 = vadd.f32 %v447, %v1242
        %v1282 = vadd.f32 %v448, %v1246
        %v1283 = vadd.f32 %v449, %v1248
        %v1284 = vadd.f32 %v450, %v1250
        %v1285 = vadd.f32 %v451, %v1252
        %1286 = vst [vmem:[#allocation2] sm:$0xff] %v1254
        %1287 = vst [vmem:[#allocation2 + $0x8] sm:$0xff] %v1255
        %1288 = vst [vmem:[#allocation2 + $0x10] sm:$0xff] %v1256
        %1289 = vst [vmem:[#allocation2 + $0x18] sm:$0xff] %v1257
        %1290 = vst [vmem:[#allocation2 + $0x20] sm:$0xff] %v1258
        %1291 = vst [vmem:[#allocation2 + $0x28] sm:$0xff] %v1259
        %1292 = vst [vmem:[#allocation2 + $0x30] sm:$0xff] %v1260
        %1293 = vst [vmem:[#allocation2 + $0x38] sm:$0xff] %v1261
        %1294 = vst [vmem:[#allocation2 + $0x40] sm:$0xff] %v1262
        %1295 = vst [vmem:[#allocation2 + $0x48] sm:$0xff] %v1263
        %1296 = vst [vmem:[#allocation2 + $0x50] sm:$0xff] %v1264
        %1297 = vst [vmem:[#allocation2 + $0x58] sm:$0xff] %v1265
        %1298 = vst [vmem:[#allocation2 + $0x60] sm:$0xff] %v1266
        %1299 = vst [vmem:[#allocation2 + $0x68] sm:$0xff] %v1267
        %1300 = vst [vmem:[#allocation2 + $0x70] sm:$0xff] %v1268
        %1301 = vst [vmem:[#allocation2 + $0x78] sm:$0xff] %v1269
        %1302 = vst [vmem:[#allocation2 + $0x80] sm:$0xff] %v1270
        %1303 = vst [vmem:[#allocation2 + $0x88] sm:$0xff] %v1271
        %1304 = vst [vmem:[#allocation2 + $0x90] sm:$0xff] %v1272
        %1305 = vst [vmem:[#allocation2 + $0x98] sm:$0xff] %v1273
        %1306 = vst [vmem:[#allocation2 + $0xa0] sm:$0xff] %v1274
        %1307 = vst [vmem:[#allocation2 + $0xa8] sm:$0xff] %v1275
        %1308 = vst [vmem:[#allocation2 + $0xb0] sm:$0xff] %v1276
        %1309 = vst [vmem:[#allocation2 + $0xb8] sm:$0xff] %v1277
        %1310 = vst [vmem:[#allocation2 + $0xc0] sm:$0xff] %v1278
        %1311 = vst [vmem:[#allocation2 + $0xc8] sm:$0xff] %v1279
        %1312 = vst [vmem:[#allocation2 + $0xd0] sm:$0xff] %v1280
        %1313 = vst [vmem:[#allocation2 + $0xd8] sm:$0xff] %v1281
        %1314 = vst [vmem:[#allocation2 + $0xe0] sm:$0xff] %v1282
        %1315 = vst [vmem:[#allocation2 + $0xe8] sm:$0xff] %v1283
        %1316 = vst [vmem:[#allocation2 + $0xf0] sm:$0xff] %v1284
        %1317 = vst [vmem:[#allocation2 + $0xf8] sm:$0xff] %v1285
        %p1318 = scmp.eq.s32.totalorder %s32, 1
        // Predicated region
        $region53: #{tpu_custom_call.1} parent=39 // pred_check
          %p1319 = pneg %p1318
        $region54: #{tpu_custom_call.1} parent=39 // pred_check_branch
          %1321 = sbr.rel (%p1319) target = $region56
        $region55: #{tpu_custom_call.1} parent=39 // pred_region
          %v1322 = vld [vmem:[%s373] sm:$0xf]
          %v1323 = vld [vmem:[%s373 + $0x4] sm:$0xf]
          %v1324 = vld [vmem:[%s373 + $0x8] sm:$0xf]
          %v1325 = vld [vmem:[%s373 + $0xc] sm:$0xf]
          %v1326 = vld [vmem:[%s373 + $0x10] sm:$0xf]
          %v1327 = vld [vmem:[%s373 + $0x14] sm:$0xf]
          %v1328 = vld [vmem:[%s373 + $0x18] sm:$0xf]
          %v1329 = vld [vmem:[%s373 + $0x1c] sm:$0xf]
          %v1330 = vld [vmem:[%s373 + $0x20] sm:$0xf]
          %v1331 = vld [vmem:[%s373 + $0x24] sm:$0xf]
          %v1332 = vld [vmem:[%s373 + $0x28] sm:$0xf]
          %v1333 = vld [vmem:[%s373 + $0x2c] sm:$0xf]
          %v1334 = vld [vmem:[%s373 + $0x30] sm:$0xf]
          %v1335 = vld [vmem:[%s373 + $0x34] sm:$0xf]
          %v1336 = vld [vmem:[%s373 + $0x38] sm:$0xf]
          %v1337 = vld [vmem:[%s373 + $0x3c] sm:$0xf]
          %v1338 = vld [vmem:[%s379] sm:$0xff]
          %v1355 = vunpack.c.l.b16 %v1322
          %v1356 = vunpack.c.l.b16 %v1323
          %v1357 = vunpack.c.l.b16 %v1324
          %v1358 = vunpack.c.l.b16 %v1325
          %v1359 = vunpack.c.l.b16 %v1326
          %v1360 = vunpack.c.l.b16 %v1327
          %v1361 = vunpack.c.l.b16 %v1328
          %v1362 = vunpack.c.l.b16 %v1329
          %v1363 = vunpack.c.l.b16 %v1330
          %v1364 = vunpack.c.l.b16 %v1331
          %v1365 = vunpack.c.l.b16 %v1332
          %v1366 = vunpack.c.l.b16 %v1333
          %v1367 = vunpack.c.l.b16 %v1334
          %v1368 = vunpack.c.l.b16 %v1335
          %v1369 = vunpack.c.l.b16 %v1336
          %v1370 = vunpack.c.l.b16 %v1337
          %v1371 = vpack.c.b16 %v1356, %v1355
          %v1372 = vpack.c.b16 %v1358, %v1357
          %v1373 = vpack.c.b16 %v1360, %v1359
          %v1374 = vpack.c.b16 %v1362, %v1361
          %v1375 = vpack.c.b16 %v1364, %v1363
          %v1376 = vpack.c.b16 %v1366, %v1365
          %v1377 = vpack.c.b16 %v1368, %v1367
          %v1378 = vpack.c.b16 %v1370, %v1369
          %v1380 = vunpack.c.l.b16 %v1338
          %v1381 = vunpack.c.h.b16 %v1338
          %v1382 = vpack.c.b16 %v1380, %v1380
          %v1383 = vpack.c.b16 %v1381, %v1381
          %vm1384 = vcmask 64512
          %v1386 = vsel %vm1384, %v1371, 0
          %v1389 = vsel %vm1384, %v1372, 0
          %v1392 = vsel %vm1384, %v1373, 0
          %v1395 = vsel %vm1384, %v1374, 0
          %v1398 = vsel %vm1384, %v1375, 0
          %v1401 = vsel %vm1384, %v1376, 0
          %v1404 = vsel %vm1384, %v1377, 0
          %v1407 = vsel %vm1384, %v1378, 0
          %vm1409 = vcmask 1043456
          %v1411 = vsel %vm1409, %v1382, 0
          %v1414 = vsel %vm1409, %v1383, 0
          %1416 = vmatprep.subr.bf16.mxu0 %v1414
          %1417 = vmatpush1.bf16.msra.mxu0 %v1411
          %1418 = vmatprep.subr.bf16.mxu0 0
          %1419 = vmatpush1.bf16.msra.mxu0 0
          %1420 = vmatprep.subr.bf16.mxu0 0
          %1421 = vmatpush1.bf16.msra.mxu0 0
          %1422 = vmatprep.subr.bf16.mxu0 0
          %1423 = vmatpush1.bf16.msra.mxu0 0
          %1424 = vmatprep.subr.bf16.mxu0 0
          %1425 = vmatpush1.bf16.msra.mxu0 0
          %1426 = vmatprep.subr.bf16.mxu0 0
          %1427 = vmatpush1.bf16.msra.mxu0 0
          %1428 = vmatprep.subr.bf16.mxu0 0
          %1429 = vmatpush1.bf16.msra.mxu0 0
          %1430 = vmatprep.subr.bf16.mxu0 0
          %1431 = vmatpush1.bf16.msra.mxu0 0
          %1432 = vmatprep.subr.bf16.mxu0 0
          %1433 = vmatpush1.bf16.msra.mxu0 0
          %1434 = vmatprep.subr.bf16.mxu0 0
          %1435 = vmatpush1.bf16.msra.mxu0 0
          %1436 = vmatprep.subr.bf16.mxu0 0
          %1437 = vmatpush1.bf16.msra.mxu0 0
          %1438 = vmatprep.subr.bf16.mxu0 0
          %1439 = vmatpush1.bf16.msra.mxu0 0
          %1440 = vmatprep.subr.bf16.mxu0 0
          %1441 = vmatpush1.bf16.msra.mxu0 0
          %1442 = vmatprep.subr.bf16.mxu0 0
          %1443 = vmatpush1.bf16.msra.mxu0 0
          %1444 = vmatprep.subr.bf16.mxu0 0
          %1445 = vmatpush1.bf16.msra.mxu0 0
          %1446 = vmatprep.subr.bf16.mxu0 0
          %1447 = vmatpush1.bf16.msra.mxu0 0
          %1448 = vmatprep.mubr.bf16.mxu0 0
          %1449 = vmatmul.mubr.bf16.gmra.mrb[0].mxu0 %v1386
          %v1450 = vpop.f32.mrb[0].mxu0
          %v1451 = vadd.f32 0.0, %v1450
          %v1452 = vpop.f32.mrb[0].mxu0
          %v1453 = vadd.f32 0.0, %v1452
          %v1454 = vpop.f32.mrb[0].mxu0
          %v1455 = vadd.f32 0.0, %v1454
          %v1456 = vpop.f32.mrb[0].mxu0
          %v1457 = vadd.f32 0.0, %v1456
          %1458 = vmatprep.mubr.bf16.mxu0 0
          %1459 = vmatmul.mubr.bf16.gmra.mrb[0].mxu0 %v1389
          %v1460 = vpop.f32.mrb[0].mxu0
          %v1461 = vadd.f32 0.0, %v1460
          %v1462 = vpop.f32.mrb[0].mxu0
          %v1463 = vadd.f32 0.0, %v1462
          %v1464 = vpop.f32.mrb[0].mxu0
          %v1465 = vadd.f32 0.0, %v1464
          %v1466 = vpop.f32.mrb[0].mxu0
          %v1467 = vadd.f32 0.0, %v1466
          %1468 = vmatprep.mubr.bf16.mxu0 0
          %1469 = vmatmul.mubr.bf16.gmra.mrb[0].mxu0 %v1392
          %v1470 = vpop.f32.mrb[0].mxu0
          %v1471 = vadd.f32 0.0, %v1470
          %v1472 = vpop.f32.mrb[0].mxu0
          %v1473 = vadd.f32 0.0, %v1472
          %v1474 = vpop.f32.mrb[0].mxu0
          %v1475 = vadd.f32 0.0, %v1474
          %v1476 = vpop.f32.mrb[0].mxu0
          %v1477 = vadd.f32 0.0, %v1476
          %1478 = vmatprep.mubr.bf16.mxu0 0
          %1479 = vmatmul.mubr.bf16.gmra.mrb[0].mxu0 %v1395
          %v1480 = vpop.f32.mrb[0].mxu0
          %v1481 = vadd.f32 0.0, %v1480
          %v1482 = vpop.f32.mrb[0].mxu0
          %v1483 = vadd.f32 0.0, %v1482
          %v1484 = vpop.f32.mrb[0].mxu0
          %v1485 = vadd.f32 0.0, %v1484
          %v1486 = vpop.f32.mrb[0].mxu0
          %v1487 = vadd.f32 0.0, %v1486
          %1488 = vmatprep.mubr.bf16.mxu0 0
          %1489 = vmatmul.mubr.bf16.gmra.mrb[0].mxu0 %v1398
          %v1490 = vpop.f32.mrb[0].mxu0
          %v1491 = vadd.f32 0.0, %v1490
          %v1492 = vpop.f32.mrb[0].mxu0
          %v1493 = vadd.f32 0.0, %v1492
          %v1494 = vpop.f32.mrb[0].mxu0
          %v1495 = vadd.f32 0.0, %v1494
          %v1496 = vpop.f32.mrb[0].mxu0
          %v1497 = vadd.f32 0.0, %v1496
          %1498 = vmatprep.mubr.bf16.mxu0 0
          %1499 = vmatmul.mubr.bf16.gmra.mrb[0].mxu0 %v1401
          %v1500 = vpop.f32.mrb[0].mxu0
          %v1501 = vadd.f32 0.0, %v1500
          %v1502 = vpop.f32.mrb[0].mxu0
          %v1503 = vadd.f32 0.0, %v1502
          %v1504 = vpop.f32.mrb[0].mxu0
          %v1505 = vadd.f32 0.0, %v1504
          %v1506 = vpop.f32.mrb[0].mxu0
          %v1507 = vadd.f32 0.0, %v1506
          %1508 = vmatprep.mubr.bf16.mxu0 0
          %1509 = vmatmul.mubr.bf16.gmra.mrb[0].mxu0 %v1404
          %v1510 = vpop.f32.mrb[0].mxu0
          %v1511 = vadd.f32 0.0, %v1510
          %v1512 = vpop.f32.mrb[0].mxu0
          %v1513 = vadd.f32 0.0, %v1512
          %v1514 = vpop.f32.mrb[0].mxu0
          %v1515 = vadd.f32 0.0, %v1514
          %v1516 = vpop.f32.mrb[0].mxu0
          %v1517 = vadd.f32 0.0, %v1516
          %1518 = vmatprep.mubr.bf16.mxu0 0
          %1519 = vmatmul.mubr.bf16.gmra.mrb[0].mxu0 %v1407
          %v1520 = vpop.f32.mrb[0].mxu0
          %v1521 = vadd.f32 0.0, %v1520
          %v1522 = vpop.f32.mrb[0].mxu0
          %v1523 = vadd.f32 0.0, %v1522
          %v1524 = vpop.f32.mrb[0].mxu0
          %v1525 = vadd.f32 0.0, %v1524
          %v1526 = vpop.f32.mrb[0].mxu0
          %v1527 = vadd.f32 0.0, %v1526
          %1528 = vdwg.mxu0
          %v1529 = vld [vmem:[#allocation2] sm:$0xff]
          %v1530 = vld [vmem:[#allocation2 + $0x8] sm:$0xff]
          %v1531 = vld [vmem:[#allocation2 + $0x10] sm:$0xff]
          %v1532 = vld [vmem:[#allocation2 + $0x18] sm:$0xff]
          %v1533 = vld [vmem:[#allocation2 + $0x20] sm:$0xff]
          %v1534 = vld [vmem:[#allocation2 + $0x28] sm:$0xff]
          %v1535 = vld [vmem:[#allocation2 + $0x30] sm:$0xff]
          %v1536 = vld [vmem:[#allocation2 + $0x38] sm:$0xff]
          %v1537 = vld [vmem:[#allocation2 + $0x40] sm:$0xff]
          %v1538 = vld [vmem:[#allocation2 + $0x48] sm:$0xff]
          %v1539 = vld [vmem:[#allocation2 + $0x50] sm:$0xff]
          %v1540 = vld [vmem:[#allocation2 + $0x58] sm:$0xff]
          %v1541 = vld [vmem:[#allocation2 + $0x60] sm:$0xff]
          %v1542 = vld [vmem:[#allocation2 + $0x68] sm:$0xff]
          %v1543 = vld [vmem:[#allocation2 + $0x70] sm:$0xff]
          %v1544 = vld [vmem:[#allocation2 + $0x78] sm:$0xff]
          %v1545 = vld [vmem:[#allocation2 + $0x80] sm:$0xff]
          %v1546 = vld [vmem:[#allocation2 + $0x88] sm:$0xff]
          %v1547 = vld [vmem:[#allocation2 + $0x90] sm:$0xff]
          %v1548 = vld [vmem:[#allocation2 + $0x98] sm:$0xff]
          %v1549 = vld [vmem:[#allocation2 + $0xa0] sm:$0xff]
          %v1550 = vld [vmem:[#allocation2 + $0xa8] sm:$0xff]
          %v1551 = vld [vmem:[#allocation2 + $0xb0] sm:$0xff]
          %v1552 = vld [vmem:[#allocation2 + $0xb8] sm:$0xff]
          %v1553 = vld [vmem:[#allocation2 + $0xc0] sm:$0xff]
          %v1554 = vld [vmem:[#allocation2 + $0xc8] sm:$0xff]
          %v1555 = vld [vmem:[#allocation2 + $0xd0] sm:$0xff]
          %v1556 = vld [vmem:[#allocation2 + $0xd8] sm:$0xff]
          %v1557 = vld [vmem:[#allocation2 + $0xe0] sm:$0xff]
          %v1558 = vld [vmem:[#allocation2 + $0xe8] sm:$0xff]
          %v1559 = vld [vmem:[#allocation2 + $0xf0] sm:$0xff]
          %v1560 = vld [vmem:[#allocation2 + $0xf8] sm:$0xff]
          %v1561 = vld [vmem:[%s367] sm:$0x3]
          %v1562 = vunpack.c.l.bf16 %v1561
          %v1564 = vlaneseq
          %v1565 = vshrl.u32 %v1564, 7
          %v1566 = vsub.s32 0, %v1565
          %v1567 = vrot.slane %v1562, %v1566
          %v1568 = vlaneseq
          %v1569 = vshrl.u32 %v1568, 7
          %v1570 = vsub.s32 2, %v1569
          %v1571 = vrot.slane %v1562, %v1570
          %v1574 = vlaneseq
          %v1575 = vshrl.u32 %v1574, 7
          %v1576 = vsub.s32 0, %v1575
          %v1577 = vrot.slane %v1567, %v1576
          %v1578 = vlaneseq
          %v1579 = vshrl.u32 %v1578, 7
          %v1580 = vsub.s32 0, %v1579
          %v1581 = vrot.slane %v1571, %v1580
          %v1582 = vadd.f32 %v1529, %v1577
          %v1583 = vadd.f32 %v1530, %v1581
          %v1584 = vadd.f32 %v1531, %v1577
          %v1585 = vadd.f32 %v1532, %v1581
          %v1586 = vadd.f32 %v1533, %v1577
          %v1587 = vadd.f32 %v1534, %v1581
          %v1588 = vadd.f32 %v1535, %v1577
          %v1589 = vadd.f32 %v1536, %v1581
          %v1590 = vadd.f32 %v1537, %v1577
          %v1591 = vadd.f32 %v1538, %v1581
          %v1592 = vadd.f32 %v1539, %v1577
          %v1593 = vadd.f32 %v1540, %v1581
          %v1594 = vadd.f32 %v1541, %v1577
          %v1595 = vadd.f32 %v1542, %v1581
          %v1596 = vadd.f32 %v1543, %v1577
          %v1597 = vadd.f32 %v1544, %v1581
          %v1598 = vadd.f32 %v1545, %v1577
          %v1599 = vadd.f32 %v1546, %v1581
          %v1600 = vadd.f32 %v1547, %v1577
          %v1601 = vadd.f32 %v1548, %v1581
          %v1602 = vadd.f32 %v1549, %v1577
          %v1603 = vadd.f32 %v1550, %v1581
          %v1604 = vadd.f32 %v1551, %v1577
          %v1605 = vadd.f32 %v1552, %v1581
          %v1606 = vadd.f32 %v1553, %v1577
          %v1607 = vadd.f32 %v1554, %v1581
          %v1608 = vadd.f32 %v1555, %v1577
          %v1609 = vadd.f32 %v1556, %v1581
          %v1610 = vadd.f32 %v1557, %v1577
          %v1611 = vadd.f32 %v1558, %v1581
          %v1612 = vadd.f32 %v1559, %v1577
          %v1613 = vadd.f32 %v1560, %v1581
          %v1614 = vadd.f32 %v1582, %v1451
          %v1615 = vadd.f32 %v1583, %v1453
          %v1616 = vadd.f32 %v1584, %v1455
          %v1617 = vadd.f32 %v1585, %v1457
          %v1618 = vadd.f32 %v1586, %v1461
          %v1619 = vadd.f32 %v1587, %v1463
          %v1620 = vadd.f32 %v1588, %v1465
          %v1621 = vadd.f32 %v1589, %v1467
          %v1622 = vadd.f32 %v1590, %v1471
          %v1623 = vadd.f32 %v1591, %v1473
          %v1624 = vadd.f32 %v1592, %v1475
          %v1625 = vadd.f32 %v1593, %v1477
          %v1626 = vadd.f32 %v1594, %v1481
          %v1627 = vadd.f32 %v1595, %v1483
          %v1628 = vadd.f32 %v1596, %v1485
          %v1629 = vadd.f32 %v1597, %v1487
          %v1630 = vadd.f32 %v1598, %v1491
          %v1631 = vadd.f32 %v1599, %v1493
          %v1632 = vadd.f32 %v1600, %v1495
          %v1633 = vadd.f32 %v1601, %v1497
          %v1634 = vadd.f32 %v1602, %v1501
          %v1635 = vadd.f32 %v1603, %v1503
          %v1636 = vadd.f32 %v1604, %v1505
          %v1637 = vadd.f32 %v1605, %v1507
          %v1638 = vadd.f32 %v1606, %v1511
          %v1639 = vadd.f32 %v1607, %v1513
          %v1640 = vadd.f32 %v1608, %v1515
          %v1641 = vadd.f32 %v1609, %v1517
          %v1642 = vadd.f32 %v1610, %v1521
          %v1643 = vadd.f32 %v1611, %v1523
          %v1644 = vadd.f32 %v1612, %v1525
          %v1645 = vadd.f32 %v1613, %v1527
          %v1646 = vpack.c.bf16 %v1616, %v1614
          %v1647 = vpack.c.bf16 %v1617, %v1615
          %v1648 = vpack.c.bf16 %v1620, %v1618
          %v1649 = vpack.c.bf16 %v1621, %v1619
          %v1650 = vpack.c.bf16 %v1624, %v1622
          %v1651 = vpack.c.bf16 %v1625, %v1623
          %v1652 = vpack.c.bf16 %v1628, %v1626
          %v1653 = vpack.c.bf16 %v1629, %v1627
          %v1654 = vpack.c.bf16 %v1632, %v1630
          %v1655 = vpack.c.bf16 %v1633, %v1631
          %v1656 = vpack.c.bf16 %v1636, %v1634
          %v1657 = vpack.c.bf16 %v1637, %v1635
          %v1658 = vpack.c.bf16 %v1640, %v1638
          %v1659 = vpack.c.bf16 %v1641, %v1639
          %v1660 = vpack.c.bf16 %v1644, %v1642
          %v1661 = vpack.c.bf16 %v1645, %v1643
          %v1678 = vunpack.c.l.b16 %v1646
          %v1679 = vunpack.c.l.b16 %v1647
          %v1680 = vunpack.c.h.b16 %v1646
          %v1681 = vunpack.c.h.b16 %v1647
          %v1682 = vunpack.c.l.b16 %v1648
          %v1683 = vunpack.c.l.b16 %v1649
          %v1684 = vunpack.c.h.b16 %v1648
          %v1685 = vunpack.c.h.b16 %v1649
          %v1686 = vunpack.c.l.b16 %v1650
          %v1687 = vunpack.c.l.b16 %v1651
          %v1688 = vunpack.c.h.b16 %v1650
          %v1689 = vunpack.c.h.b16 %v1651
          %v1690 = vunpack.c.l.b16 %v1652
          %v1691 = vunpack.c.l.b16 %v1653
          %v1692 = vunpack.c.h.b16 %v1652
          %v1693 = vunpack.c.h.b16 %v1653
          %v1694 = vunpack.c.l.b16 %v1654
          %v1695 = vunpack.c.l.b16 %v1655
          %v1696 = vunpack.c.h.b16 %v1654
          %v1697 = vunpack.c.h.b16 %v1655
          %v1698 = vunpack.c.l.b16 %v1656
          %v1699 = vunpack.c.l.b16 %v1657
          %v1700 = vunpack.c.h.b16 %v1656
          %v1701 = vunpack.c.h.b16 %v1657
          %v1702 = vunpack.c.l.b16 %v1658
          %v1703 = vunpack.c.l.b16 %v1659
          %v1704 = vunpack.c.h.b16 %v1658
          %v1705 = vunpack.c.h.b16 %v1659
          %v1706 = vunpack.c.l.b16 %v1660
          %v1707 = vunpack.c.l.b16 %v1661
          %v1708 = vunpack.c.h.b16 %v1660
          %v1709 = vunpack.c.h.b16 %v1661
          %v1710 = vpack.c.b16 %v1679, %v1678
          %v1711 = vpack.c.b16 %v1681, %v1680
          %v1712 = vpack.c.b16 %v1683, %v1682
          %v1713 = vpack.c.b16 %v1685, %v1684
          %v1714 = vpack.c.b16 %v1687, %v1686
          %v1715 = vpack.c.b16 %v1689, %v1688
          %v1716 = vpack.c.b16 %v1691, %v1690
          %v1717 = vpack.c.b16 %v1693, %v1692
          %v1718 = vpack.c.b16 %v1695, %v1694
          %v1719 = vpack.c.b16 %v1697, %v1696
          %v1720 = vpack.c.b16 %v1699, %v1698
          %v1721 = vpack.c.b16 %v1701, %v1700
          %v1722 = vpack.c.b16 %v1703, %v1702
          %v1723 = vpack.c.b16 %v1705, %v1704
          %v1724 = vpack.c.b16 %v1707, %v1706
          %v1725 = vpack.c.b16 %v1709, %v1708
          %1742 = vst [vmem:[%s359] sm:$0xff] %v1710
          %1743 = vst [vmem:[%s359 + $0x8] sm:$0xff] %v1711
          %1744 = vst [vmem:[%s359 + $0x10] sm:$0xff] %v1712
          %1745 = vst [vmem:[%s359 + $0x18] sm:$0xff] %v1713
          %1746 = vst [vmem:[%s359 + $0x20] sm:$0xff] %v1714
          %1747 = vst [vmem:[%s359 + $0x28] sm:$0xff] %v1715
          %1748 = vst [vmem:[%s359 + $0x30] sm:$0xff] %v1716
          %1749 = vst [vmem:[%s359 + $0x38] sm:$0xff] %v1717
          %1750 = vst [vmem:[%s359 + $0x40] sm:$0xff] %v1718
          %1751 = vst [vmem:[%s359 + $0x48] sm:$0xff] %v1719
          %1752 = vst [vmem:[%s359 + $0x50] sm:$0xff] %v1720
          %1753 = vst [vmem:[%s359 + $0x58] sm:$0xff] %v1721
          %1754 = vst [vmem:[%s359 + $0x60] sm:$0xff] %v1722
          %1755 = vst [vmem:[%s359 + $0x68] sm:$0xff] %v1723
          %1756 = vst [vmem:[%s359 + $0x70] sm:$0xff] %v1724
          %1757 = vst [vmem:[%s359 + $0x78] sm:$0xff] %v1725
        $region56: #{tpu_custom_call.1} parent=39 // pred_fallthru
          _
        %s1758 = sand.u32 %s188, 1
        %s1759 = scalar_lea.sflag [#allocation5], %s1758
        %s1760 = sand.u32 %s188, 1
        %s1761 = smul.addr %s1760, 128
        %s1762 = scalar_lea.vmem [#allocation8], %s1761
        // Predicated region
        $region57: #{tpu_custom_call.1} parent=39 // pred_check
          %p1763 = pneg %p198
        $region58: #{tpu_custom_call.1} parent=39 // pred_check_branch
          %1765 = sbr.rel (%p1763) target = $region60
        $region59: #{tpu_custom_call.1} parent=39 // pred_region
          %s1766 = smul.u32 16, %s30
          %s1767 = smul.u32 2, %s31
          %s1769 = ssub.s32 2048, 2048
          %1770 = vsyncadd %s1759, %s1769
          %s1771 = smul.addr %s1766, 4
          %s1772 = sadd.s32 %s1767, %s1771
          %s1773 = smul.addr %s1772, 64
          %s1774 = scalar_lea.hbm %s5, %s1773
          %s1775 = sshll.u32 %s1762, 4
          %s1776 = int_to_ptr.vmem [resolvable:$true] %s1775
          %1781 = dma.vmem_to_hbm [thread:$0]  %s1776, 2048, %s1774, %s1759, 128, 256, 8
        $region60: #{tpu_custom_call.1} parent=39 // pred_fallthru
          _
      $region40: #{tpu_custom_call.1} parent=5 // pred_fallthru
        _
      %p1782 = scmp.le.s32.totalorder 2, %s20
      // Predicated region
      $region61: #{tpu_custom_call.1} parent=5 // pred_check
        %p1783 = pneg %p1782
      $region62: #{tpu_custom_call.1} parent=5 // pred_check_branch
        %1785 = sbr.rel (%p1783) target = $region64
      $region63: #{tpu_custom_call.1} parent=5 // pred_region
        %s1786 = ssub.s32 %s20, 2
        // Predicated region
        $region65: #{tpu_custom_call.1} parent=63 // pred_check
          %p1787 = pneg %p204
        $region66: #{tpu_custom_call.1} parent=63 // pred_check_branch
          %1789 = sbr.rel (%p1787) target = $region68
        $region67: #{tpu_custom_call.1} parent=63 // pred_region
          %s1790 = sand.u32 %s189, 1
          %s1791 = scalar_lea.sflag [#allocation5], %s1790
          %s1792 = sand.u32 %s189, 1
          %s1793 = smul.addr %s1792, 128
          %s1794 = scalar_lea.vmem [#allocation8], %s1793
          %1795 = dma.done %s1791, 2048
        $region68: #{tpu_custom_call.1} parent=63 // pred_fallthru
          _
      $region64: #{tpu_custom_call.1} parent=5 // pred_fallthru
        _
    $region6: #{tpu_custom_call.1} parent=1 // loop_footer
      %s24 = sadd.s32 1, %s20
    $region7: #{tpu_custom_call.1} parent=1 // loop_footer_branch
      %19 = sbr.rel target = $region3
    $region8: #{tpu_custom_call.1} parent=1 // loop_exit
      _
    %1796 = vsyncpa [#allocation4], 1
    %s1797 = scalar_lea.sflag [#allocation4], 1
    %1798 = vsyncpa %s1797, 1
    %1799 = vsyncpa [#allocation7], 1
    %s1800 = scalar_lea.sflag [#allocation7], 1
    %1801 = vsyncpa %s1800, 1
    %1802 = vsyncpa [#allocation5], 1
    %s1803 = scalar_lea.sflag [#allocation5], 1
    %1804 = vsyncpa %s1803, 1

</llo_original>
